<compile_context>
chip_gen: v7x
topology: tpu7x:2x2x1
jax: 0.10.0
libtpu: 0.0.40
codegen_flags: <defaults>
</compile_context>

<pallas_src>
import functools

import jax
import jax.numpy as jnp
from jax.experimental import pallas as pl
from jax.experimental.pallas import tpu as pltpu


ACT_DTYPE = jnp.bfloat16
BN_EPS = 1e-5
VMEM_LIMIT_BYTES = 48 * 1024 * 1024      # < v7x 64 MiB physical, > v5e/v6e defaults
MM_VMEM_BUDGET = 24 * 1024 * 1024        # budget used when picking matmul tiles
RESIDENT_W_BYTES = 12 * 1024 * 1024      # weight kept fully VMEM-resident below this


# -----------------------------------------------------------------------------
# Helpers (static python ints)
# -----------------------------------------------------------------------------

def _ceil_div(a, b):
    return -(-a // b)


def _compiler_params(dims):
    return pltpu.CompilerParams(dimension_semantics=dims,
                                vmem_limit_bytes=VMEM_LIMIT_BYTES)


def _pick_tm_resident(m, k, n):
    """Largest M tile whose A double-buffer + resident weight + outputs fit budget."""
    if m <= 512:
        return m
    w_bytes = k * n * 2
    for tm in (1024, 512, 256, 128):
        if tm > m:
            continue
        need = 2 * tm * k * 2 + w_bytes + 2 * tm * n * 2 + tm * n * 4
        if need <= MM_VMEM_BUDGET:
            return tm
    return 128


def _pick_tn(n):
    if n <= 512:
        return n
    for c in (512, 256, 128):
        if n % c == 0:
            return c
    return n


def _pick_tk(k):
    for c in (2048, 1024, 512, 256):
        if k % c == 0:
            return c
    return k


def _lane_group(m, c):
    """Group g rows so the lane width g*C reaches 128 (lane-dense stores)."""
    if c >= 128 or c <= 0 or 128 % c != 0:
        return 1
    g = 128 // c
    while g > 1 and m % g != 0:
        g //= 2
    return g


def _row_tile(m, c):
    """~3 MiB bf16 row tiles (channel-scaled), multiple of 8 unless full extent."""
    target = (3 << 20) // max(1, 2 * c)
    if target >= m:
        return m
    return max(8, (target // 8) * 8)


# -----------------------------------------------------------------------------
# Pallas kernels
# -----------------------------------------------------------------------------

def _mm_stats_res_kernel(a_ref, b_ref, o_ref, ssum_ref, ssq_ref, *, m_total):
    """Resident-weight matmul: O = A @ B (bf16 in, f32 acc) + masked BN stats."""
    i = pl.program_id(0)                       # top level -- never inside pl.when
    y = jnp.dot(a_ref[...], b_ref[...], preferred_element_type=jnp.float32)
    o_ref[...] = y.astype(o_ref.dtype)
    tm = a_ref.shape[0]
    rows_valid = m_total - i * tm              # mask ragged-edge rows for exact stats
    mask = jax.lax.broadcasted_iota(jnp.int32, (tm, 1), 0) < rows_valid
    ym = jnp.where(mask, y, 0.0)
    ssum_ref[...] = jnp.sum(ym, axis=0, keepdims=True)[None]
    ssq_ref[...] = jnp.sum(ym * ym, axis=0, keepdims=True)[None]


def _mm_stats_blk_kernel(a_ref, b_ref, o_ref, ssum_ref, ssq_ref, acc_ref, *, m_total):
    """K-blocked fallback for very large weights (not resident in VMEM)."""
    i = pl.program_id(0)                       # hoisted: only closed over below
    k = pl.program_id(2)
    nk = pl.num_programs(2)

    @pl.when(k == 0)
    def _init():
        acc_ref[...] = jnp.zeros_like(acc_ref)

    acc_ref[...] += jnp.dot(a_ref[...], b_ref[...],
                            preferred_element_type=jnp.float32)

    @pl.when(k == nk - 1)
    def _done():
        y = acc_ref[...]
        o_ref[...] = y.astype(o_ref.dtype)
        tm = a_ref.shape[0]
        rows_valid = m_total - i * tm
        mask = jax.lax.broadcasted_iota(jnp.int32, (tm, 1), 0) < rows_valid
        ym = jnp.where(mask, y, 0.0)
        ssum_ref[...] = jnp.sum(ym, axis=0, keepdims=True)[None]
        ssq_ref[...] = jnp.sum(ym * ym, axis=0, keepdims=True)[None]


def _mm_bias_kernel(a_ref, b_ref, bias_ref, o_ref):
    """O = A @ B + bias (final FC only; everything VMEM-resident, single shot)."""
    y = jnp.dot(a_ref[...], b_ref[...], preferred_element_type=jnp.float32)
    o_ref[...] = (y + bias_ref[...]).astype(o_ref.dtype)


def _bn_act_kernel(y_ref, scale_ref, shift_ref, o_ref, *, relu):
    y = y_ref[...].astype(jnp.float32)
    out = y * scale_ref[...] + shift_ref[...]
    if relu:
        out = jnp.maximum(out, 0.0)
    o_ref[...] = out.astype(o_ref.dtype)


def _bn_act_res_kernel(y_ref, scale_ref, shift_ref, res_ref, o_ref, *, relu):
    y = y_ref[...].astype(jnp.float32)
    out = y * scale_ref[...] + shift_ref[...] + res_ref[...].astype(jnp.float32)
    if relu:
        out = jnp.maximum(out, 0.0)
    o_ref[...] = out.astype(o_ref.dtype)


def _max9_kernel(*refs):
    o_ref = refs[-1]
    m = refs[0][...]
    for r in refs[1:-1]:
        m = jnp.maximum(m, r[...])
    o_ref[...] = m


def _gap_kernel(x_ref, o_ref):
    x = x_ref[...].astype(jnp.float32)
    o_ref[...] = jnp.sum(x, axis=1, keepdims=True) * (1.0 / x.shape[1])


# -----------------------------------------------------------------------------
# Pallas wrappers
# -----------------------------------------------------------------------------

def pallas_matmul_stats(a, b):
    """A (M,K) bf16, B (K,N) bf16 -> (Y bf16 (M,N), col_sum f32 (N,), col_sq f32 (N,))."""
    M, K = a.shape
    K2, N = b.shape
    assert K == K2

    if K * N * 2 <= RESIDENT_W_BYTES:
        # Weight fully resident in VMEM; grid over M tiles only.
        tm = _pick_tm_resident(M, K, N)
        mt = _ceil_div(M, tm)
        y, ssum, ssq = pl.pallas_call(
            functools.partial(_mm_stats_res_kernel, m_total=M),
            out_shape=(jax.ShapeDtypeStruct((M, N), ACT_DTYPE),
                       jax.ShapeDtypeStruct((mt, 1, N), jnp.float32),
                       jax.ShapeDtypeStruct((mt, 1, N), jnp.float32)),
            grid_spec=pltpu.PrefetchScalarGridSpec(
                num_scalar_prefetch=0,
                grid=(mt,),
                in_specs=[
                    pl.BlockSpec((tm, K), lambda i: (i, 0)),
                    pl.BlockSpec((K, N), lambda i: (0, 0)),   # constant -> loaded once
                ],
                out_specs=[
                    pl.BlockSpec((tm, N), lambda i: (i, 0)),
                    pl.BlockSpec((1, 1, N), lambda i: (i, 0, 0)),
                    pl.BlockSpec((1, 1, N), lambda i: (i, 0, 0)),
                ]),
            compiler_params=_compiler_params(("parallel",)),
        )(a, b)
    else:
        # K-blocked accumulation fallback (weights too large to keep resident).
        tn = _pick_tn(N)
        tk = _pick_tk(K)
        assert K % tk == 0, (K, tk)
        assert N % tn == 0, (N, tn)
        tm = 256 if M > 256 else M
        mt, nt, kt = _ceil_div(M, tm), N // tn, K // tk
        y, ssum, ssq = pl.pallas_call(
            functools.partial(_mm_stats_blk_kernel, m_total=M),
            out_shape=(jax.ShapeDtypeStruct((M, N), ACT_DTYPE),
                       jax.ShapeDtypeStruct((mt, 1, N), jnp.float32),
                       jax.ShapeDtypeStruct((mt, 1, N), jnp.float32)),
            grid_spec=pltpu.PrefetchScalarGridSpec(
                num_scalar_prefetch=0,
                grid=(mt, nt, kt),
                in_specs=[
                    pl.BlockSpec((tm, tk), lambda i, j, k: (i, k)),
                    pl.BlockSpec((tk, tn), lambda i, j, k: (k, j)),
                ],
                out_specs=[
                    pl.BlockSpec((tm, tn), lambda i, j, k: (i, j)),
                    pl.BlockSpec((1, 1, tn), lambda i, j, k: (i, 0, j)),
                    pl.BlockSpec((1, 1, tn), lambda i, j, k: (i, 0, j)),
                ],
                scratch_shapes=[pltpu.VMEM((tm, tn), jnp.float32)]),
            compiler_params=_compiler_params(("parallel", "parallel", "arbitrary")),
        )(a, b)
        mt = _ceil_div(M, tm)

    col_sum = jnp.sum(ssum.reshape(-1, N), axis=0)
    col_sq = jnp.sum(ssq.reshape(-1, N), axis=0)
    return y, col_sum, col_sq


def pallas_matmul_bias(a, b, bias, out_dtype=jnp.float32):
    """Final FC: A (M,K) bf16, B (K,N) bf16, bias (N,) f32 -> (M,N). Tiny; one shot."""
    M, K = a.shape
    K2, N = b.shape
    assert K == K2
    return pl.pallas_call(
        _mm_bias_kernel,
        out_shape=jax.ShapeDtypeStruct((M, N), out_dtype),
    )(a, b, bias.astype(jnp.float32).reshape(1, N))


def pallas_bn_act(y2d, scale, shift, relu, residual=None):
    """Row-tiled BN-affine (+ optional residual) + optional ReLU, lane-densified."""
    M, C = y2d.shape
    g = _lane_group(M, C)                    # group rows so lane width >= 128
    Mg, Cg = M // g, C * g
    y2 = y2d.reshape(Mg, Cg)
    scale2d = jnp.tile(scale.astype(jnp.float32), g).reshape(1, Cg)
    shift2d = jnp.tile(shift.astype(jnp.float32), g).reshape(1, Cg)
    tr = _row_tile(Mg, Cg)
    grid = (_ceil_div(Mg, tr),)
    row_spec = pl.BlockSpec((tr, Cg), lambda i: (i, 0))
    vec_spec = pl.BlockSpec((1, Cg), lambda i: (0, 0))
    if residual is None:
        kern = functools.partial(_bn_act_kernel, relu=relu)
        in_specs = [row_spec, vec_spec, vec_spec]
        args = (y2, scale2d, shift2d)
    else:
        kern = functools.partial(_bn_act_res_kernel, relu=relu)
        in_specs = [row_spec, vec_spec, vec_spec, row_spec]
        args = (y2, scale2d, shift2d, residual.reshape(Mg, Cg))
    out = pl.pallas_call(
        kern,
        out_shape=jax.ShapeDtypeStruct((Mg, Cg), ACT_DTYPE),
        grid_spec=pltpu.PrefetchScalarGridSpec(
            num_scalar_prefetch=0, grid=grid,
            in_specs=in_specs, out_specs=row_spec),
        compiler_params=_compiler_params(("parallel",)),
    )(*args)
    return out.reshape(M, C)


def maxpool_3x3_s2_p1(x_nhwc):
    # TODO(synk): replace the 9 materialized strided views with row-band reads of
    # the single padded slab to cut HBM traffic further.
    N, H, W, C = x_nhwc.shape
    xp = jnp.pad(x_nhwc, ((0, 0), (1, 1), (1, 1), (0, 0)), constant_values=-1e30)
    OH = (H + 2 - 3) // 2 + 1
    OW = (W + 2 - 3) // 2 + 1
    M2 = N * OH * OW
    views = []
    for dy in range(3):
        for dx in range(3):
            views.append(xp[:, dy:dy + 2 * (OH - 1) + 1:2,
                            dx:dx + 2 * (OW - 1) + 1:2, :].reshape(M2, C))
    g = _lane_group(M2, C)
    Mg, Cg = M2 // g, C * g
    views = [v.reshape(Mg, Cg) for v in views]
    tr = _row_tile(Mg, Cg)
    row_spec = pl.BlockSpec((tr, Cg), lambda i: (i, 0))
    out = pl.pallas_call(
        _max9_kernel,
        out_shape=jax.ShapeDtypeStruct((Mg, Cg), x_nhwc.dtype),
        grid_spec=pltpu.PrefetchScalarGridSpec(
            num_scalar_prefetch=0, grid=(_ceil_div(Mg, tr),),
            in_specs=[row_spec] * 9, out_specs=row_spec),
        compiler_params=_compiler_params(("parallel",)),
    )(*views)
    return out.reshape(N, OH, OW, C)


def global_avgpool(x_nhwc):
    N, H, W, C = x_nhwc.shape
    x3 = x_nhwc.reshape(N, H * W, C)
    out = pl.pallas_call(
        _gap_kernel,
        out_shape=jax.ShapeDtypeStruct((N, 1, C), jnp.float32),
    )(x3)
    return out.reshape(N, C)


# -----------------------------------------------------------------------------
# Conv (im2col glue in JAX; matmul + BN + act in Pallas)
# -----------------------------------------------------------------------------

def _im2col(x_nhwc, kh, kw, stride, pad):
    """Returns (patches (N*OH*OW, KH*KW*Cin) bf16, (N, OH, OW))."""
    # TODO(synk): implicit im2col (tap axis on the matmul grid reading the padded
    # slab directly) would remove this materialized patches tensor.
    N, H, W, C = x_nhwc.shape
    xp = jnp.pad(x_nhwc, ((0, 0), (pad, pad), (pad, pad), (0, 0)))
    OH = (H + 2 * pad - kh) // stride + 1
    OW = (W + 2 * pad - kw) // stride + 1
    cols = []
    for dy in range(kh):
        for dx in range(kw):
            cols.append(xp[:, dy:dy + stride * (OH - 1) + 1:stride,
                           dx:dx + stride * (OW - 1) + 1:stride, :])
    patches = jnp.concatenate(cols, axis=-1).reshape(N * OH * OW, kh * kw * C)
    return patches, (N, OH, OW)


def _mix_weight(templates, coeffs, member_id):
    # W = sum_t coeff[member_id, t] * template[t]
    return jnp.einsum("t,t...->...", coeffs[member_id], templates)


def conv_bn_relu(x_nhwc, p, member_id, stride, pad, relu=True, residual2d=None):
    """SConv2d (bank-mixed weight) -> SBatchNorm2d (+ optional residual) -> act."""
    W = _mix_weight(p["templates"], p["coeffs"], member_id)   # (Cout, Cin, KH, KW)
    cout, cin, kh, kw = W.shape
    patches, (N, OH, OW) = _im2col(x_nhwc, kh, kw, stride, pad)
    Wmat = jnp.transpose(W, (2, 3, 1, 0)).reshape(kh * kw * cin, cout).astype(ACT_DTYPE)
    y2d, col_sum, col_sq = pallas_matmul_stats(patches, Wmat)  # (M, Cout) bf16
    M = N * OH * OW
    mean = col_sum / M
    var = jnp.maximum(col_sq / M - mean * mean, 0.0)           # biased, like PyTorch
    gamma = p["bn_gamma"][member_id]
    beta = p["bn_beta"][member_id]
    scale = gamma * jax.lax.rsqrt(var + BN_EPS)
    shift = beta - mean * scale
    y2d = pallas_bn_act(y2d, scale, shift, relu=relu, residual=residual2d)
    return y2d.reshape(N, OH, OW, cout)


def basic_block(x_nhwc, bp, member_id):
    stride = 2 if bp["downsample"] else 1
    out = conv_bn_relu(x_nhwc, bp["conv_a"], member_id, stride, 1, relu=True)
    if bp["proj"] is not None:
        res = conv_bn_relu(x_nhwc, bp["proj"], member_id, stride, 0, relu=False)
    else:
        res = x_nhwc
    C = out.shape[-1]
    res2d = res.reshape(-1, C)
    # BN(conv_b) + residual add + ReLU fused in one row-tiled pass.
    out = conv_bn_relu(out, bp["conv_b"], member_id, 1, 1, relu=True,
                       residual2d=res2d)
    return out


# -----------------------------------------------------------------------------
# Parameter bank construction (deterministic synthetic init)
# -----------------------------------------------------------------------------

NUM_TEMPLATES = 2
NUM_MEMBERS = 2


def _kaiming_std(fan_in):
    return (2.0 / fan_in) ** 0.5


def _conv_bn_params(key, layer_id, cin, cout, k):
    kk = jax.random.fold_in(key, layer_id)
    templates = jax.random.normal(
        jax.random.fold_in(kk, 0), (NUM_TEMPLATES, cout, cin, k, k),
        jnp.float32) * _kaiming_std(cin * k * k)
    coeffs = jax.random.normal(
        jax.random.fold_in(kk, 1), (NUM_MEMBERS, NUM_TEMPLATES),
        jnp.float32) / NUM_TEMPLATES
    return dict(templates=templates, coeffs=coeffs,
                bn_gamma=jnp.ones((NUM_MEMBERS, cout), jnp.float32),
                bn_beta=jnp.zeros((NUM_MEMBERS, cout), jnp.float32))


def init_resnet_bank(key, module_sizes, module_channels, num_classes, width=1):
    params = {}
    c0 = module_channels[0]
    params["conv1"] = _conv_bn_params(key, 0, 3, c0 // 2, 3)
    params["conv2"] = _conv_bn_params(key, 1, c0 // 2, c0 // 2, 3)
    params["conv3"] = _conv_bn_params(key, 2, c0 // 2, c0, 3)
    layer_id = 3
    blocks = []
    out_ch = c0
    for mi, (num_layers, mid) in enumerate(zip(module_sizes, module_channels)):
        for i in range(num_layers):
            in_ch = out_ch
            downsample = (i == 0 and mi > 0)
            block_out = mid * width
            bp = dict(downsample=downsample)
            bp["conv_a"] = _conv_bn_params(key, layer_id, in_ch, block_out, 3)
            layer_id += 1
            bp["conv_b"] = _conv_bn_params(key, layer_id, block_out, block_out, 3)
            layer_id += 1
            if downsample or in_ch != block_out:
                bp["proj"] = _conv_bn_params(key, layer_id, in_ch, block_out, 1)
                layer_id += 1
            else:
                bp["proj"] = None
            blocks.append(bp)
            out_ch = block_out
    params["blocks"] = blocks
    kk = jax.random.fold_in(key, layer_id)
    params["fc"] = dict(
        templates=jax.random.normal(
            jax.random.fold_in(kk, 0), (NUM_TEMPLATES, num_classes, out_ch),
            jnp.float32) * _kaiming_std(out_ch),
        coeffs=jax.random.normal(
            jax.random.fold_in(kk, 1), (NUM_MEMBERS, NUM_TEMPLATES),
            jnp.float32) / NUM_TEMPLATES,
        bias=jnp.zeros((num_classes,), jnp.float32),
    )
    params["out_channels"] = out_ch
    return params


# -----------------------------------------------------------------------------
# Forward pass (mirrors ResNetBank.forward)
# -----------------------------------------------------------------------------

def resnet_bank_forward(params, x_nchw, member_id):
    # NCHW (PyTorch) -> NHWC once at entry; bf16 activations between kernels.
    x = jnp.transpose(x_nchw, (0, 2, 3, 1)).astype(ACT_DTYPE)
    x = conv_bn_relu(x, params["conv1"], member_id, stride=2, pad=1, relu=True)
    x = conv_bn_relu(x, params["conv2"], member_id, stride=1, pad=1, relu=True)
    x = conv_bn_relu(x, params["conv3"], member_id, stride=1, pad=1, relu=True)
    x = maxpool_3x3_s2_p1(x)
    for bp in params["blocks"]:
        x = basic_block(x, bp, member_id)
    feat = global_avgpool(x)                                    # (N, C) f32
    Wfc = _mix_weight(params["fc"]["templates"], params["fc"]["coeffs"],
                      member_id)                                # (num_classes, C)
    logits = pallas_matmul_bias(feat.astype(ACT_DTYPE),
                                jnp.transpose(Wfc).astype(ACT_DTYPE),
                                params["fc"]["bias"],
                                out_dtype=jnp.float32)
    return logits


# -----------------------------------------------------------------------------
# Demo
# -----------------------------------------------------------------------------

if __name__ == "__main__":
    key = jax.random.PRNGKey(0)
    # Small synthetic config: module_sizes=(1,1), module_channels=(8,16),
    # num_classes=10, width=1, batch=2, 3x32x32 input (NCHW like PyTorch).
    module_sizes = (1, 1)
    module_channels = (8, 16)
    num_classes = 10

    params = init_resnet_bank(jax.random.fold_in(key, 1),
                              module_sizes, module_channels, num_classes,
                              width=1)
    x = jax.random.normal(jax.random.fold_in(key, 2), (2, 3, 32, 32),
                          jnp.float32)

    logits = resnet_bank_forward(params, x, member_id=0)
    logits = jax.block_until_ready(logits)
    assert logits.shape == (2, num_classes), logits.shape
    assert bool(jnp.all(jnp.isfinite(logits)))
    print("KERNEL_OK")
</pallas_src>

<mosaic_0001>
module attributes {stable_mosaic.version = 11 : i64} {
  func.func @_mm_stats_res_kernel(%arg0: i32, %arg1: memref<512x27xbf16, #tpu.memory_space<vmem>>, %arg2: memref<27x4xbf16, #tpu.memory_space<vmem>>, %arg3: memref<512x4xbf16, #tpu.memory_space<vmem>>, %arg4: memref<1x1x4xf32, #tpu.memory_space<vmem>>, %arg5: memref<1x1x4xf32, #tpu.memory_space<vmem>>) attributes {dimension_semantics = [#tpu.dimension_semantics<parallel>], iteration_bounds = array<i64: 1>, scalar_prefetch = 0 : i64, scratch_operands = 0 : i64, tpu.core_type = #tpu.core_type<tc>, window_params = [{transform_indices = @transform_0, window_bounds = array<i64: 512, 27>}, {pipeline_mode = #tpu.pipeline_mode<synchronous>, transform_indices = @transform_1, window_bounds = array<i64: 27, 4>}, {transform_indices = @transform_2, window_bounds = array<i64: 512, 4>}, {transform_indices = @transform_3, window_bounds = array<i64: 1, 1, 4>}, {transform_indices = @transform_4, window_bounds = array<i64: 1, 1, 4>}]} {
    %c0 = arith.constant 0 : index
    %c0_0 = arith.constant 0 : index
    %0 = vector.load %arg1[%c0, %c0_0] : memref<512x27xbf16, #tpu.memory_space<vmem>>, vector<512x27xbf16>
    %c0_1 = arith.constant 0 : index
    %c0_2 = arith.constant 0 : index
    %1 = vector.load %arg2[%c0_1, %c0_2] : memref<27x4xbf16, #tpu.memory_space<vmem>>, vector<27x4xbf16>
    %cst = arith.constant dense<0.000000e+00> : vector<512x4xf32>
    %2 = tpu.matmul %0, %1, %cst {dimension_numbers = #tpu.dot_dimension_numbers<[1], [0], [0], [1], [0, 0, 1, 1], [], []>} : vector<512x27xbf16>, vector<27x4xbf16>, vector<512x4xf32> -> vector<512x4xf32>
    %3 = arith.truncf %2 : vector<512x4xf32> to vector<512x4xbf16>
    %c0_3 = arith.constant 0 : index
    %c0_4 = arith.constant 0 : index
    %4 = vector.load %arg3[%c0_3, %c0_4] : memref<512x4xbf16, #tpu.memory_space<vmem>>, vector<512x4xbf16>
    tpu.vector_store %arg3[%c0_3, %c0_4], %3 {strides = array<i32>} : memref<512x4xbf16, #tpu.memory_space<vmem>>, vector<512x4xbf16>,
    %c512_i32 = arith.constant 512 : i32
    %5 = arith.muli %arg0, %c512_i32 : i32
    %c512_i32_5 = arith.constant 512 : i32
    %6 = arith.subi %c512_i32_5, %5 : i32
    %7 = tpu.iota {dimensions = array<i32: 0>} : vector<512x1xi32>
    %8 = vector.broadcast %6 : i32 to vector<512x1xi32>
    %9 = arith.cmpi slt, %7, %8 : vector<512x1xi32>
    %cst_6 = arith.constant 0.000000e+00 : f32
    %10 = vector.shape_cast %9 : vector<512x1xi1> to vector<512x1xi1>
    %11 = vector.broadcast %10 : vector<512x1xi1> to vector<512x4xi1>
    %12 = vector.broadcast %cst_6 : f32 to vector<512x4xf32>
    %13 = arith.select %11, %2, %12 : vector<512x4xi1>, vector<512x4xf32>
    %cst_7 = arith.constant dense<0.000000e+00> : vector<4xf32>
    %14 = vector.multi_reduction <add>, %13, %cst_7 [0] : vector<512x4xf32> to vector<4xf32>
    %15 = vector.shape_cast %14 : vector<4xf32> to vector<1x4xf32>
    %16 = vector.shape_cast %15 : vector<1x4xf32> to vector<1x1x4xf32>
    %c0_8 = arith.constant 0 : index
    %c0_9 = arith.constant 0 : index
    %c0_10 = arith.constant 0 : index
    %17 = vector.load %arg4[%c0_8, %c0_9, %c0_10] : memref<1x1x4xf32, #tpu.memory_space<vmem>>, vector<1x1x4xf32>
    tpu.vector_store %arg4[%c0_8, %c0_9, %c0_10], %16 {strides = array<i32>} : memref<1x1x4xf32, #tpu.memory_space<vmem>>, vector<1x1x4xf32>,
    %18 = arith.mulf %13, %13 : vector<512x4xf32>
    %cst_11 = arith.constant dense<0.000000e+00> : vector<4xf32>
    %19 = vector.multi_reduction <add>, %18, %cst_11 [0] : vector<512x4xf32> to vector<4xf32>
    %20 = vector.shape_cast %19 : vector<4xf32> to vector<1x4xf32>
    %21 = vector.shape_cast %20 : vector<1x4xf32> to vector<1x1x4xf32>
    %c0_12 = arith.constant 0 : index
    %c0_13 = arith.constant 0 : index
    %c0_14 = arith.constant 0 : index
    %22 = vector.load %arg5[%c0_12, %c0_13, %c0_14] : memref<1x1x4xf32, #tpu.memory_space<vmem>>, vector<1x1x4xf32>
    tpu.vector_store %arg5[%c0_12, %c0_13, %c0_14], %21 {strides = array<i32>} : memref<1x1x4xf32, #tpu.memory_space<vmem>>, vector<1x1x4xf32>,
    return
  }
  func.func @transform_0(%arg0: i32) -> (i32, i32) {
    %c0_i32 = arith.constant 0 : i32
    %c0_i32_0 = arith.constant 0 : i32
    return %arg0, %c0_i32 : i32, i32
  }
  func.func @transform_1(%arg0: i32) -> (i32, i32) {
    %c0_i32 = arith.constant 0 : i32
    %c0_i32_0 = arith.constant 0 : i32
    %c0_i32_1 = arith.constant 0 : i32
    return %c0_i32, %c0_i32_0 : i32, i32
  }
  func.func @transform_2(%arg0: i32) -> (i32, i32) {
    %c0_i32 = arith.constant 0 : i32
    %c0_i32_0 = arith.constant 0 : i32
    return %arg0, %c0_i32 : i32, i32
  }
  func.func @transform_3(%arg0: i32) -> (i32, i32, i32) {
    %c0_i32 = arith.constant 0 : i32
    %c0_i32_0 = arith.constant 0 : i32
    %c0_i32_1 = arith.constant 0 : i32
    return %arg0, %c0_i32, %c0_i32_0 : i32, i32, i32
  }
  func.func @transform_4(%arg0: i32) -> (i32, i32, i32) {
    %c0_i32 = arith.constant 0 : i32
    %c0_i32_0 = arith.constant 0 : i32
    %c0_i32_1 = arith.constant 0 : i32
    return %arg0, %c0_i32, %c0_i32_0 : i32, i32, i32
  }
}

</mosaic_0001>

<llo_original>
// kernel: tpu_custom_call.1
$region0: #{tpu_custom_call.1}
  #allocation0 [shape = 'u32[]', space=smem, size = 0x4, offset = 0x4, fixed_abs, tag = 'smem constant byte address 0x4 - core index']
  #allocation1 [shape = 'u32[144,128]{1,0:T(1,128)}', space=vmem, size = 0x12000, scoped, tag = 'internal scratch']
  %s0 = inlined_call_operand.vmem [shape: bf16[512,27], index: 0, kind: input, shape index: {}]
  %s1 = inlined_call_operand.vmem [shape: bf16[27,4], index: 1, kind: input, shape index: {}]
  %s2 = inlined_call_operand.vmem [shape: bf16[512,4], index: 2, kind: output, shape index: {0}]
  %s3 = inlined_call_operand.hbm [shape: f32[1,1,4], index: 3, kind: output, shape index: {1}]
  %s4 = inlined_call_operand.hbm [shape: f32[1,1,4], index: 4, kind: output, shape index: {2}]
  %5 = xla_tuple %s2, %s3, %s4
  %s6 = sld [smem:[#allocation0]]
  $region34: #{tpu_custom_call.1} parent=0
    _
  %s8 = ssub.s32 1, %s6
  %s9 = scalar_select 0, %s8, %s6
  $region1: #{tpu_custom_call.1} parent=0
    #allocation2 [shape = 'u8[512]{0}', space=vmem, size = 0x400, scoped, tag = 'output window, operand 1, single buffered']
    #allocation3 [shape = 's32[1]{0}', space=sflag, size = 0x4, scoped, tag = 'scoped memory for tpu_custom_call.1']
    #allocation4 [shape = 'u8[512]{0}', space=vmem, size = 0x400, scoped, tag = 'output window, operand 2, single buffered']
    #allocation5 [shape = 's32[1]{0}', space=sflag, size = 0x4, scoped, tag = 'scoped memory for tpu_custom_call.1']
    %10 = vsyncpa [#allocation3], 0
    %11 = vsyncpa [#allocation5], 0
    // Predicated region
    $region2: #{tpu_custom_call.1} parent=1 // pred_check
      _
    $region3: #{tpu_custom_call.1} parent=1 // pred_check_branch
      %13 = sbr.rel (0) target = $region5
    $region4: #{tpu_custom_call.1} parent=1 // pred_region
      _
    $region5: #{tpu_custom_call.1} parent=1 // pred_fallthru
      _
    // Predicated region
    $region6: #{tpu_custom_call.1} parent=1 // pred_check
      _
    $region7: #{tpu_custom_call.1} parent=1 // pred_check_branch
      %15 = sbr.rel (0) target = $region9
    $region8: #{tpu_custom_call.1} parent=1 // pred_region
      _
    $region9: #{tpu_custom_call.1} parent=1 // pred_fallthru
      _
    %v17 = vld [vmem:[%s0] sm:$0xf]
    %v18 = vld [vmem:[%s0 + $0x4] sm:$0xf]
    %v19 = vld [vmem:[%s0 + $0x8] sm:$0xf]
    %v20 = vld [vmem:[%s0 + $0xc] sm:$0xf]
    %v21 = vld [vmem:[%s0 + $0x10] sm:$0xf]
    %v22 = vld [vmem:[%s0 + $0x14] sm:$0xf]
    %v23 = vld [vmem:[%s0 + $0x18] sm:$0xf]
    %v24 = vld [vmem:[%s0 + $0x1c] sm:$0xf]
    %v25 = vld [vmem:[%s0 + $0x20] sm:$0xf]
    %v26 = vld [vmem:[%s0 + $0x24] sm:$0xf]
    %v27 = vld [vmem:[%s0 + $0x28] sm:$0xf]
    %v28 = vld [vmem:[%s0 + $0x2c] sm:$0xf]
    %v29 = vld [vmem:[%s0 + $0x30] sm:$0xf]
    %v30 = vld [vmem:[%s0 + $0x34] sm:$0xf]
    %v31 = vld [vmem:[%s0 + $0x38] sm:$0xf]
    %v32 = vld [vmem:[%s0 + $0x3c] sm:$0xf]
    %v33 = vld [vmem:[%s0 + $0x40] sm:$0xf]
    %v34 = vld [vmem:[%s0 + $0x44] sm:$0xf]
    %v35 = vld [vmem:[%s0 + $0x48] sm:$0xf]
    %v36 = vld [vmem:[%s0 + $0x4c] sm:$0xf]
    %v37 = vld [vmem:[%s0 + $0x50] sm:$0xf]
    %v38 = vld [vmem:[%s0 + $0x54] sm:$0xf]
    %v39 = vld [vmem:[%s0 + $0x58] sm:$0xf]
    %v40 = vld [vmem:[%s0 + $0x5c] sm:$0xf]
    %v41 = vld [vmem:[%s0 + $0x60] sm:$0xf]
    %v42 = vld [vmem:[%s0 + $0x64] sm:$0xf]
    %v43 = vld [vmem:[%s0 + $0x68] sm:$0xf]
    %v44 = vld [vmem:[%s0 + $0x6c] sm:$0xf]
    %v45 = vld [vmem:[%s0 + $0x70] sm:$0xf]
    %v46 = vld [vmem:[%s0 + $0x74] sm:$0xf]
    %v47 = vld [vmem:[%s0 + $0x78] sm:$0xf]
    %v48 = vld [vmem:[%s0 + $0x7c] sm:$0xf]
    %v49 = vld [vmem:[%s0 + $0x80] sm:$0xf]
    %v50 = vld [vmem:[%s0 + $0x84] sm:$0xf]
    %v51 = vld [vmem:[%s0 + $0x88] sm:$0xf]
    %v52 = vld [vmem:[%s0 + $0x8c] sm:$0xf]
    %v53 = vld [vmem:[%s0 + $0x90] sm:$0xf]
    %v54 = vld [vmem:[%s0 + $0x94] sm:$0xf]
    %v55 = vld [vmem:[%s0 + $0x98] sm:$0xf]
    %v56 = vld [vmem:[%s0 + $0x9c] sm:$0xf]
    %v57 = vld [vmem:[%s0 + $0xa0] sm:$0xf]
    %v58 = vld [vmem:[%s0 + $0xa4] sm:$0xf]
    %v59 = vld [vmem:[%s0 + $0xa8] sm:$0xf]
    %v60 = vld [vmem:[%s0 + $0xac] sm:$0xf]
    %v61 = vld [vmem:[%s0 + $0xb0] sm:$0xf]
    %v62 = vld [vmem:[%s0 + $0xb4] sm:$0xf]
    %v63 = vld [vmem:[%s0 + $0xb8] sm:$0xf]
    %v64 = vld [vmem:[%s0 + $0xbc] sm:$0xf]
    %v65 = vld [vmem:[%s0 + $0xc0] sm:$0xf]
    %v66 = vld [vmem:[%s0 + $0xc4] sm:$0xf]
    %v67 = vld [vmem:[%s0 + $0xc8] sm:$0xf]
    %v68 = vld [vmem:[%s0 + $0xcc] sm:$0xf]
    %v69 = vld [vmem:[%s0 + $0xd0] sm:$0xf]
    %v70 = vld [vmem:[%s0 + $0xd4] sm:$0xf]
    %v71 = vld [vmem:[%s0 + $0xd8] sm:$0xf]
    %v72 = vld [vmem:[%s0 + $0xdc] sm:$0xf]
    %v73 = vld [vmem:[%s0 + $0xe0] sm:$0xf]
    %v74 = vld [vmem:[%s0 + $0xe4] sm:$0xf]
    %v75 = vld [vmem:[%s0 + $0xe8] sm:$0xf]
    %v76 = vld [vmem:[%s0 + $0xec] sm:$0xf]
    %v77 = vld [vmem:[%s0 + $0xf0] sm:$0xf]
    %v78 = vld [vmem:[%s0 + $0xf4] sm:$0xf]
    %v79 = vld [vmem:[%s0 + $0xf8] sm:$0xf]
    %v80 = vld [vmem:[%s0 + $0xfc] sm:$0xf]
    %v81 = vld [vmem:[%s1] sm:$0xf]
    %v82 = vld [vmem:[%s1 + $0x4] sm:$0xf]
    %v83 = vld [vmem:[%s1 + $0x8] sm:$0xf]
    %v84 = vld [vmem:[%s1 + $0xc] sm:$0x3]
    %v149 = vunpack.c.l.b16 %v17
    %v150 = vunpack.c.l.b16 %v18
    %v151 = vunpack.c.l.b16 %v19
    %v152 = vunpack.c.l.b16 %v20
    %v153 = vunpack.c.l.b16 %v21
    %v154 = vunpack.c.l.b16 %v22
    %v155 = vunpack.c.l.b16 %v23
    %v156 = vunpack.c.l.b16 %v24
    %v157 = vunpack.c.l.b16 %v25
    %v158 = vunpack.c.l.b16 %v26
    %v159 = vunpack.c.l.b16 %v27
    %v160 = vunpack.c.l.b16 %v28
    %v161 = vunpack.c.l.b16 %v29
    %v162 = vunpack.c.l.b16 %v30
    %v163 = vunpack.c.l.b16 %v31
    %v164 = vunpack.c.l.b16 %v32
    %v165 = vunpack.c.l.b16 %v33
    %v166 = vunpack.c.l.b16 %v34
    %v167 = vunpack.c.l.b16 %v35
    %v168 = vunpack.c.l.b16 %v36
    %v169 = vunpack.c.l.b16 %v37
    %v170 = vunpack.c.l.b16 %v38
    %v171 = vunpack.c.l.b16 %v39
    %v172 = vunpack.c.l.b16 %v40
    %v173 = vunpack.c.l.b16 %v41
    %v174 = vunpack.c.l.b16 %v42
    %v175 = vunpack.c.l.b16 %v43
    %v176 = vunpack.c.l.b16 %v44
    %v177 = vunpack.c.l.b16 %v45
    %v178 = vunpack.c.l.b16 %v46
    %v179 = vunpack.c.l.b16 %v47
    %v180 = vunpack.c.l.b16 %v48
    %v181 = vunpack.c.l.b16 %v49
    %v182 = vunpack.c.l.b16 %v50
    %v183 = vunpack.c.l.b16 %v51
    %v184 = vunpack.c.l.b16 %v52
    %v185 = vunpack.c.l.b16 %v53
    %v186 = vunpack.c.l.b16 %v54
    %v187 = vunpack.c.l.b16 %v55
    %v188 = vunpack.c.l.b16 %v56
    %v189 = vunpack.c.l.b16 %v57
    %v190 = vunpack.c.l.b16 %v58
    %v191 = vunpack.c.l.b16 %v59
    %v192 = vunpack.c.l.b16 %v60
    %v193 = vunpack.c.l.b16 %v61
    %v194 = vunpack.c.l.b16 %v62
    %v195 = vunpack.c.l.b16 %v63
    %v196 = vunpack.c.l.b16 %v64
    %v197 = vunpack.c.l.b16 %v65
    %v198 = vunpack.c.l.b16 %v66
    %v199 = vunpack.c.l.b16 %v67
    %v200 = vunpack.c.l.b16 %v68
    %v201 = vunpack.c.l.b16 %v69
    %v202 = vunpack.c.l.b16 %v70
    %v203 = vunpack.c.l.b16 %v71
    %v204 = vunpack.c.l.b16 %v72
    %v205 = vunpack.c.l.b16 %v73
    %v206 = vunpack.c.l.b16 %v74
    %v207 = vunpack.c.l.b16 %v75
    %v208 = vunpack.c.l.b16 %v76
    %v209 = vunpack.c.l.b16 %v77
    %v210 = vunpack.c.l.b16 %v78
    %v211 = vunpack.c.l.b16 %v79
    %v212 = vunpack.c.l.b16 %v80
    %v213 = vpack.c.b16 %v150, %v149
    %v214 = vpack.c.b16 %v152, %v151
    %v215 = vpack.c.b16 %v154, %v153
    %v216 = vpack.c.b16 %v156, %v155
    %v217 = vpack.c.b16 %v158, %v157
    %v218 = vpack.c.b16 %v160, %v159
    %v219 = vpack.c.b16 %v162, %v161
    %v220 = vpack.c.b16 %v164, %v163
    %v221 = vpack.c.b16 %v166, %v165
    %v222 = vpack.c.b16 %v168, %v167
    %v223 = vpack.c.b16 %v170, %v169
    %v224 = vpack.c.b16 %v172, %v171
    %v225 = vpack.c.b16 %v174, %v173
    %v226 = vpack.c.b16 %v176, %v175
    %v227 = vpack.c.b16 %v178, %v177
    %v228 = vpack.c.b16 %v180, %v179
    %v229 = vpack.c.b16 %v182, %v181
    %v230 = vpack.c.b16 %v184, %v183
    %v231 = vpack.c.b16 %v186, %v185
    %v232 = vpack.c.b16 %v188, %v187
    %v233 = vpack.c.b16 %v190, %v189
    %v234 = vpack.c.b16 %v192, %v191
    %v235 = vpack.c.b16 %v194, %v193
    %v236 = vpack.c.b16 %v196, %v195
    %v237 = vpack.c.b16 %v198, %v197
    %v238 = vpack.c.b16 %v200, %v199
    %v239 = vpack.c.b16 %v202, %v201
    %v240 = vpack.c.b16 %v204, %v203
    %v241 = vpack.c.b16 %v206, %v205
    %v242 = vpack.c.b16 %v208, %v207
    %v243 = vpack.c.b16 %v210, %v209
    %v244 = vpack.c.b16 %v212, %v211
    %v249 = vunpack.c.l.b16 %v81
    %v250 = vunpack.c.l.b16 %v82
    %v251 = vunpack.c.l.b16 %v83
    %v252 = vunpack.c.l.b16 %v84
    %v253 = vpack.c.b16 %v250, %v249
    %v254 = vpack.c.b16 %v252, %v251
    %vm256 = vcmask 220160
    %v258 = vsel %vm256, %v213, 0
    %v261 = vsel %vm256, %v214, 0
    %v264 = vsel %vm256, %v215, 0
    %v267 = vsel %vm256, %v216, 0
    %v270 = vsel %vm256, %v217, 0
    %v273 = vsel %vm256, %v218, 0
    %v276 = vsel %vm256, %v219, 0
    %v279 = vsel %vm256, %v220, 0
    %v282 = vsel %vm256, %v221, 0
    %v285 = vsel %vm256, %v222, 0
    %v288 = vsel %vm256, %v223, 0
    %v291 = vsel %vm256, %v224, 0
    %v294 = vsel %vm256, %v225, 0
    %v297 = vsel %vm256, %v226, 0
    %v300 = vsel %vm256, %v227, 0
    %v303 = vsel %vm256, %v228, 0
    %v306 = vsel %vm256, %v229, 0
    %v309 = vsel %vm256, %v230, 0
    %v312 = vsel %vm256, %v231, 0
    %v315 = vsel %vm256, %v232, 0
    %v318 = vsel %vm256, %v233, 0
    %v321 = vsel %vm256, %v234, 0
    %v324 = vsel %vm256, %v235, 0
    %v327 = vsel %vm256, %v236, 0
    %v330 = vsel %vm256, %v237, 0
    %v333 = vsel %vm256, %v238, 0
    %v336 = vsel %vm256, %v239, 0
    %v339 = vsel %vm256, %v240, 0
    %v342 = vsel %vm256, %v241, 0
    %v345 = vsel %vm256, %v242, 0
    %v348 = vsel %vm256, %v243, 0
    %v351 = vsel %vm256, %v244, 0
    %vm353 = vcmask 1044480
    %vm354 = vcmask 1045504
    %v355 = vsel %vm353, 4294967295, 65535
    %v356 = vsel %vm354, %v355, 0
    %v358 = vand.u32 %v254, %v356
    %360 = vmatprep.subr.bf16.mxu0 0
    %361 = vmatpush1.bf16.msra.mxu0 %v253
    %362 = vmatprep.subr.bf16.mxu0 0
    %363 = vmatpush1.bf16.msra.mxu0 %v358
    %364 = vmatprep.subr.bf16.mxu0 0
    %365 = vmatpush1.bf16.msra.mxu0 0
    %366 = vmatprep.subr.bf16.mxu0 0
    %367 = vmatpush1.bf16.msra.mxu0 0
    %368 = vmatprep.subr.bf16.mxu0 0
    %369 = vmatpush1.bf16.msra.mxu0 0
    %370 = vmatprep.subr.bf16.mxu0 0
    %371 = vmatpush1.bf16.msra.mxu0 0
    %372 = vmatprep.subr.bf16.mxu0 0
    %373 = vmatpush1.bf16.msra.mxu0 0
    %374 = vmatprep.subr.bf16.mxu0 0
    %375 = vmatpush1.bf16.msra.mxu0 0
    %376 = vmatprep.subr.bf16.mxu0 0
    %377 = vmatpush1.bf16.msra.mxu0 0
    %378 = vmatprep.subr.bf16.mxu0 0
    %379 = vmatpush1.bf16.msra.mxu0 0
    %380 = vmatprep.subr.bf16.mxu0 0
    %381 = vmatpush1.bf16.msra.mxu0 0
    %382 = vmatprep.subr.bf16.mxu0 0
    %383 = vmatpush1.bf16.msra.mxu0 0
    %384 = vmatprep.subr.bf16.mxu0 0
    %385 = vmatpush1.bf16.msra.mxu0 0
    %386 = vmatprep.subr.bf16.mxu0 0
    %387 = vmatpush1.bf16.msra.mxu0 0
    %388 = vmatprep.subr.bf16.mxu0 0
    %389 = vmatpush1.bf16.msra.mxu0 0
    %390 = vmatprep.subr.bf16.mxu0 0
    %391 = vmatpush1.bf16.msra.mxu0 0
    %392 = vmatprep.mubr.bf16.mxu0 0
    %393 = vmatmul.mubr.bf16.gmra.mrb[0].mxu0 %v258
    %v394 = vpop.f32.mrb[0].mxu0
    %v395 = vadd.f32 0.0, %v394
    %v396 = vpop.f32.mrb[0].mxu0
    %v397 = vpop.f32.mrb[0].mxu0
    %v398 = vadd.f32 0.0, %v397
    %v399 = vpop.f32.mrb[0].mxu0
    %400 = vmatprep.mubr.bf16.mxu0 0
    %401 = vmatmul.mubr.bf16.gmra.mrb[0].mxu0 %v261
    %v402 = vpop.f32.mrb[0].mxu0
    %v403 = vadd.f32 0.0, %v402
    %v404 = vpop.f32.mrb[0].mxu0
    %v405 = vpop.f32.mrb[0].mxu0
    %v406 = vadd.f32 0.0, %v405
    %v407 = vpop.f32.mrb[0].mxu0
    %408 = vmatprep.mubr.bf16.mxu0 0
    %409 = vmatmul.mubr.bf16.gmra.mrb[0].mxu0 %v264
    %v410 = vpop.f32.mrb[0].mxu0
    %v411 = vadd.f32 0.0, %v410
    %v412 = vpop.f32.mrb[0].mxu0
    %v413 = vpop.f32.mrb[0].mxu0
    %v414 = vadd.f32 0.0, %v413
    %v415 = vpop.f32.mrb[0].mxu0
    %416 = vmatprep.mubr.bf16.mxu0 0
    %417 = vmatmul.mubr.bf16.gmra.mrb[0].mxu0 %v267
    %v418 = vpop.f32.mrb[0].mxu0
    %v419 = vadd.f32 0.0, %v418
    %v420 = vpop.f32.mrb[0].mxu0
    %v421 = vpop.f32.mrb[0].mxu0
    %v422 = vadd.f32 0.0, %v421
    %v423 = vpop.f32.mrb[0].mxu0
    %424 = vmatprep.mubr.bf16.mxu0 0
    %425 = vmatmul.mubr.bf16.gmra.mrb[0].mxu0 %v270
    %v426 = vpop.f32.mrb[0].mxu0
    %v427 = vadd.f32 0.0, %v426
    %v428 = vpop.f32.mrb[0].mxu0
    %v429 = vpop.f32.mrb[0].mxu0
    %v430 = vadd.f32 0.0, %v429
    %v431 = vpop.f32.mrb[0].mxu0
    %432 = vmatprep.mubr.bf16.mxu0 0
    %433 = vmatmul.mubr.bf16.gmra.mrb[0].mxu0 %v273
    %v434 = vpop.f32.mrb[0].mxu0
    %v435 = vadd.f32 0.0, %v434
    %v436 = vpop.f32.mrb[0].mxu0
    %v437 = vpop.f32.mrb[0].mxu0
    %v438 = vadd.f32 0.0, %v437
    %v439 = vpop.f32.mrb[0].mxu0
    %440 = vmatprep.mubr.bf16.mxu0 0
    %441 = vmatmul.mubr.bf16.gmra.mrb[0].mxu0 %v276
    %v442 = vpop.f32.mrb[0].mxu0
    %v443 = vadd.f32 0.0, %v442
    %v444 = vpop.f32.mrb[0].mxu0
    %v445 = vpop.f32.mrb[0].mxu0
    %v446 = vadd.f32 0.0, %v445
    %v447 = vpop.f32.mrb[0].mxu0
    %448 = vmatprep.mubr.bf16.mxu0 0
    %449 = vmatmul.mubr.bf16.gmra.mrb[0].mxu0 %v279
    %v450 = vpop.f32.mrb[0].mxu0
    %v451 = vadd.f32 0.0, %v450
    %v452 = vpop.f32.mrb[0].mxu0
    %v453 = vpop.f32.mrb[0].mxu0
    %v454 = vadd.f32 0.0, %v453
    %v455 = vpop.f32.mrb[0].mxu0
    %456 = vmatprep.mubr.bf16.mxu0 0
    %457 = vmatmul.mubr.bf16.gmra.mrb[0].mxu0 %v282
    %v458 = vpop.f32.mrb[0].mxu0
    %v459 = vadd.f32 0.0, %v458
    %v460 = vpop.f32.mrb[0].mxu0
    %v461 = vpop.f32.mrb[0].mxu0
    %v462 = vadd.f32 0.0, %v461
    %v463 = vpop.f32.mrb[0].mxu0
    %464 = vmatprep.mubr.bf16.mxu0 0
    %465 = vmatmul.mubr.bf16.gmra.mrb[0].mxu0 %v285
    %v466 = vpop.f32.mrb[0].mxu0
    %v467 = vadd.f32 0.0, %v466
    %v468 = vpop.f32.mrb[0].mxu0
    %v469 = vpop.f32.mrb[0].mxu0
    %v470 = vadd.f32 0.0, %v469
    %v471 = vpop.f32.mrb[0].mxu0
    %472 = vmatprep.mubr.bf16.mxu0 0
    %473 = vmatmul.mubr.bf16.gmra.mrb[0].mxu0 %v288
    %v474 = vpop.f32.mrb[0].mxu0
    %v475 = vadd.f32 0.0, %v474
    %v476 = vpop.f32.mrb[0].mxu0
    %v477 = vpop.f32.mrb[0].mxu0
    %v478 = vadd.f32 0.0, %v477
    %v479 = vpop.f32.mrb[0].mxu0
    %480 = vmatprep.mubr.bf16.mxu0 0
    %481 = vmatmul.mubr.bf16.gmra.mrb[0].mxu0 %v291
    %v482 = vpop.f32.mrb[0].mxu0
    %v483 = vadd.f32 0.0, %v482
    %v484 = vpop.f32.mrb[0].mxu0
    %v485 = vpop.f32.mrb[0].mxu0
    %v486 = vadd.f32 0.0, %v485
    %v487 = vpop.f32.mrb[0].mxu0
    %488 = vmatprep.mubr.bf16.mxu0 0
    %489 = vmatmul.mubr.bf16.gmra.mrb[0].mxu0 %v294
    %v490 = vpop.f32.mrb[0].mxu0
    %v491 = vadd.f32 0.0, %v490
    %v492 = vpop.f32.mrb[0].mxu0
    %v493 = vpop.f32.mrb[0].mxu0
    %v494 = vadd.f32 0.0, %v493
    %v495 = vpop.f32.mrb[0].mxu0
    %496 = vmatprep.mubr.bf16.mxu0 0
    %497 = vmatmul.mubr.bf16.gmra.mrb[0].mxu0 %v297
    %v498 = vpop.f32.mrb[0].mxu0
    %v499 = vadd.f32 0.0, %v498
    %v500 = vpop.f32.mrb[0].mxu0
    %v501 = vpop.f32.mrb[0].mxu0
    %v502 = vadd.f32 0.0, %v501
    %v503 = vpop.f32.mrb[0].mxu0
    %504 = vmatprep.mubr.bf16.mxu0 0
    %505 = vmatmul.mubr.bf16.gmra.mrb[0].mxu0 %v300
    %v506 = vpop.f32.mrb[0].mxu0
    %v507 = vadd.f32 0.0, %v506
    %v508 = vpop.f32.mrb[0].mxu0
    %v509 = vpop.f32.mrb[0].mxu0
    %v510 = vadd.f32 0.0, %v509
    %v511 = vpop.f32.mrb[0].mxu0
    %512 = vmatprep.mubr.bf16.mxu0 0
    %513 = vmatmul.mubr.bf16.gmra.mrb[0].mxu0 %v303
    %v514 = vpop.f32.mrb[0].mxu0
    %v515 = vadd.f32 0.0, %v514
    %v516 = vpop.f32.mrb[0].mxu0
    %v517 = vpop.f32.mrb[0].mxu0
    %v518 = vadd.f32 0.0, %v517
    %v519 = vpop.f32.mrb[0].mxu0
    %520 = vmatprep.mubr.bf16.mxu0 0
    %521 = vmatmul.mubr.bf16.gmra.mrb[0].mxu0 %v306
    %v522 = vpop.f32.mrb[0].mxu0
    %v523 = vadd.f32 0.0, %v522
    %v524 = vpop.f32.mrb[0].mxu0
    %v525 = vpop.f32.mrb[0].mxu0
    %v526 = vadd.f32 0.0, %v525
    %v527 = vpop.f32.mrb[0].mxu0
    %528 = vmatprep.mubr.bf16.mxu0 0
    %529 = vmatmul.mubr.bf16.gmra.mrb[0].mxu0 %v309
    %v530 = vpop.f32.mrb[0].mxu0
    %v531 = vadd.f32 0.0, %v530
    %v532 = vpop.f32.mrb[0].mxu0
    %v533 = vpop.f32.mrb[0].mxu0
    %v534 = vadd.f32 0.0, %v533
    %v535 = vpop.f32.mrb[0].mxu0
    %536 = vmatprep.mubr.bf16.mxu0 0
    %537 = vmatmul.mubr.bf16.gmra.mrb[0].mxu0 %v312
    %v538 = vpop.f32.mrb[0].mxu0
    %v539 = vadd.f32 0.0, %v538
    %v540 = vpop.f32.mrb[0].mxu0
    %v541 = vpop.f32.mrb[0].mxu0
    %v542 = vadd.f32 0.0, %v541
    %v543 = vpop.f32.mrb[0].mxu0
    %544 = vmatprep.mubr.bf16.mxu0 0
    %545 = vmatmul.mubr.bf16.gmra.mrb[0].mxu0 %v315
    %v546 = vpop.f32.mrb[0].mxu0
    %v547 = vadd.f32 0.0, %v546
    %v548 = vpop.f32.mrb[0].mxu0
    %v549 = vpop.f32.mrb[0].mxu0
    %v550 = vadd.f32 0.0, %v549
    %v551 = vpop.f32.mrb[0].mxu0
    %552 = vmatprep.mubr.bf16.mxu0 0
    %553 = vmatmul.mubr.bf16.gmra.mrb[0].mxu0 %v318
    %v554 = vpop.f32.mrb[0].mxu0
    %v555 = vadd.f32 0.0, %v554
    %v556 = vpop.f32.mrb[0].mxu0
    %v557 = vpop.f32.mrb[0].mxu0
    %v558 = vadd.f32 0.0, %v557
    %v559 = vpop.f32.mrb[0].mxu0
    %560 = vmatprep.mubr.bf16.mxu0 0
    %561 = vmatmul.mubr.bf16.gmra.mrb[0].mxu0 %v321
    %v562 = vpop.f32.mrb[0].mxu0
    %v563 = vadd.f32 0.0, %v562
    %v564 = vpop.f32.mrb[0].mxu0
    %v565 = vpop.f32.mrb[0].mxu0
    %v566 = vadd.f32 0.0, %v565
    %v567 = vpop.f32.mrb[0].mxu0
    %568 = vmatprep.mubr.bf16.mxu0 0
    %569 = vmatmul.mubr.bf16.gmra.mrb[0].mxu0 %v324
    %v570 = vpop.f32.mrb[0].mxu0
    %v571 = vadd.f32 0.0, %v570
    %v572 = vpop.f32.mrb[0].mxu0
    %v573 = vpop.f32.mrb[0].mxu0
    %v574 = vadd.f32 0.0, %v573
    %v575 = vpop.f32.mrb[0].mxu0
    %576 = vmatprep.mubr.bf16.mxu0 0
    %577 = vmatmul.mubr.bf16.gmra.mrb[0].mxu0 %v327
    %v578 = vpop.f32.mrb[0].mxu0
    %v579 = vadd.f32 0.0, %v578
    %v580 = vpop.f32.mrb[0].mxu0
    %v581 = vpop.f32.mrb[0].mxu0
    %v582 = vadd.f32 0.0, %v581
    %v583 = vpop.f32.mrb[0].mxu0
    %584 = vmatprep.mubr.bf16.mxu0 0
    %585 = vmatmul.mubr.bf16.gmra.mrb[0].mxu0 %v330
    %v586 = vpop.f32.mrb[0].mxu0
    %v587 = vadd.f32 0.0, %v586
    %v588 = vpop.f32.mrb[0].mxu0
    %v589 = vpop.f32.mrb[0].mxu0
    %v590 = vadd.f32 0.0, %v589
    %v591 = vpop.f32.mrb[0].mxu0
    %592 = vmatprep.mubr.bf16.mxu0 0
    %593 = vmatmul.mubr.bf16.gmra.mrb[0].mxu0 %v333
    %v594 = vpop.f32.mrb[0].mxu0
    %v595 = vadd.f32 0.0, %v594
    %v596 = vpop.f32.mrb[0].mxu0
    %v597 = vpop.f32.mrb[0].mxu0
    %v598 = vadd.f32 0.0, %v597
    %v599 = vpop.f32.mrb[0].mxu0
    %600 = vmatprep.mubr.bf16.mxu0 0
    %601 = vmatmul.mubr.bf16.gmra.mrb[0].mxu0 %v336
    %v602 = vpop.f32.mrb[0].mxu0
    %v603 = vadd.f32 0.0, %v602
    %v604 = vpop.f32.mrb[0].mxu0
    %v605 = vpop.f32.mrb[0].mxu0
    %v606 = vadd.f32 0.0, %v605
    %v607 = vpop.f32.mrb[0].mxu0
    %608 = vmatprep.mubr.bf16.mxu0 0
    %609 = vmatmul.mubr.bf16.gmra.mrb[0].mxu0 %v339
    %v610 = vpop.f32.mrb[0].mxu0
    %v611 = vadd.f32 0.0, %v610
    %v612 = vpop.f32.mrb[0].mxu0
    %v613 = vpop.f32.mrb[0].mxu0
    %v614 = vadd.f32 0.0, %v613
    %v615 = vpop.f32.mrb[0].mxu0
    %616 = vmatprep.mubr.bf16.mxu0 0
    %617 = vmatmul.mubr.bf16.gmra.mrb[0].mxu0 %v342
    %v618 = vpop.f32.mrb[0].mxu0
    %v619 = vadd.f32 0.0, %v618
    %v620 = vpop.f32.mrb[0].mxu0
    %v621 = vpop.f32.mrb[0].mxu0
    %v622 = vadd.f32 0.0, %v621
    %v623 = vpop.f32.mrb[0].mxu0
    %624 = vmatprep.mubr.bf16.mxu0 0
    %625 = vmatmul.mubr.bf16.gmra.mrb[0].mxu0 %v345
    %v626 = vpop.f32.mrb[0].mxu0
    %v627 = vadd.f32 0.0, %v626
    %v628 = vpop.f32.mrb[0].mxu0
    %v629 = vpop.f32.mrb[0].mxu0
    %v630 = vadd.f32 0.0, %v629
    %v631 = vpop.f32.mrb[0].mxu0
    %632 = vmatprep.mubr.bf16.mxu0 0
    %633 = vmatmul.mubr.bf16.gmra.mrb[0].mxu0 %v348
    %v634 = vpop.f32.mrb[0].mxu0
    %v635 = vadd.f32 0.0, %v634
    %v636 = vpop.f32.mrb[0].mxu0
    %v637 = vpop.f32.mrb[0].mxu0
    %v638 = vadd.f32 0.0, %v637
    %v639 = vpop.f32.mrb[0].mxu0
    %640 = vmatprep.mubr.bf16.mxu0 0
    %641 = vmatmul.mubr.bf16.gmra.mrb[0].mxu0 %v351
    %v642 = vpop.f32.mrb[0].mxu0
    %v643 = vadd.f32 0.0, %v642
    %v644 = vpop.f32.mrb[0].mxu0
    %v645 = vpop.f32.mrb[0].mxu0
    %v646 = vadd.f32 0.0, %v645
    %v647 = vpop.f32.mrb[0].mxu0
    %648 = vdwg.mxu0
    %v649 = vpack.c.bf16 %v398, %v395
    %v650 = vpack.c.bf16 %v406, %v403
    %v651 = vpack.c.bf16 %v414, %v411
    %v652 = vpack.c.bf16 %v422, %v419
    %v653 = vpack.c.bf16 %v430, %v427
    %v654 = vpack.c.bf16 %v438, %v435
    %v655 = vpack.c.bf16 %v446, %v443
    %v656 = vpack.c.bf16 %v454, %v451
    %v657 = vpack.c.bf16 %v462, %v459
    %v658 = vpack.c.bf16 %v470, %v467
    %v659 = vpack.c.bf16 %v478, %v475
    %v660 = vpack.c.bf16 %v486, %v483
    %v661 = vpack.c.bf16 %v494, %v491
    %v662 = vpack.c.bf16 %v502, %v499
    %v663 = vpack.c.bf16 %v510, %v507
    %v664 = vpack.c.bf16 %v518, %v515
    %v665 = vpack.c.bf16 %v526, %v523
    %v666 = vpack.c.bf16 %v534, %v531
    %v667 = vpack.c.bf16 %v542, %v539
    %v668 = vpack.c.bf16 %v550, %v547
    %v669 = vpack.c.bf16 %v558, %v555
    %v670 = vpack.c.bf16 %v566, %v563
    %v671 = vpack.c.bf16 %v574, %v571
    %v672 = vpack.c.bf16 %v582, %v579
    %v673 = vpack.c.bf16 %v590, %v587
    %v674 = vpack.c.bf16 %v598, %v595
    %v675 = vpack.c.bf16 %v606, %v603
    %v676 = vpack.c.bf16 %v614, %v611
    %v677 = vpack.c.bf16 %v622, %v619
    %v678 = vpack.c.bf16 %v630, %v627
    %v679 = vpack.c.bf16 %v638, %v635
    %v680 = vpack.c.bf16 %v646, %v643
    %v713 = vunpack.c.l.b16 %v649
    %v714 = vunpack.c.h.b16 %v649
    %v715 = vunpack.c.l.b16 %v650
    %v716 = vunpack.c.h.b16 %v650
    %v717 = vunpack.c.l.b16 %v651
    %v718 = vunpack.c.h.b16 %v651
    %v719 = vunpack.c.l.b16 %v652
    %v720 = vunpack.c.h.b16 %v652
    %v721 = vunpack.c.l.b16 %v653
    %v722 = vunpack.c.h.b16 %v653
    %v723 = vunpack.c.l.b16 %v654
    %v724 = vunpack.c.h.b16 %v654
    %v725 = vunpack.c.l.b16 %v655
    %v726 = vunpack.c.h.b16 %v655
    %v727 = vunpack.c.l.b16 %v656
    %v728 = vunpack.c.h.b16 %v656
    %v729 = vunpack.c.l.b16 %v657
    %v730 = vunpack.c.h.b16 %v657
    %v731 = vunpack.c.l.b16 %v658
    %v732 = vunpack.c.h.b16 %v658
    %v733 = vunpack.c.l.b16 %v659
    %v734 = vunpack.c.h.b16 %v659
    %v735 = vunpack.c.l.b16 %v660
    %v736 = vunpack.c.h.b16 %v660
    %v737 = vunpack.c.l.b16 %v661
    %v738 = vunpack.c.h.b16 %v661
    %v739 = vunpack.c.l.b16 %v662
    %v740 = vunpack.c.h.b16 %v662
    %v741 = vunpack.c.l.b16 %v663
    %v742 = vunpack.c.h.b16 %v663
    %v743 = vunpack.c.l.b16 %v664
    %v744 = vunpack.c.h.b16 %v664
    %v745 = vunpack.c.l.b16 %v665
    %v746 = vunpack.c.h.b16 %v665
    %v747 = vunpack.c.l.b16 %v666
    %v748 = vunpack.c.h.b16 %v666
    %v749 = vunpack.c.l.b16 %v667
    %v750 = vunpack.c.h.b16 %v667
    %v751 = vunpack.c.l.b16 %v668
    %v752 = vunpack.c.h.b16 %v668
    %v753 = vunpack.c.l.b16 %v669
    %v754 = vunpack.c.h.b16 %v669
    %v755 = vunpack.c.l.b16 %v670
    %v756 = vunpack.c.h.b16 %v670
    %v757 = vunpack.c.l.b16 %v671
    %v758 = vunpack.c.h.b16 %v671
    %v759 = vunpack.c.l.b16 %v672
    %v760 = vunpack.c.h.b16 %v672
    %v761 = vunpack.c.l.b16 %v673
    %v762 = vunpack.c.h.b16 %v673
    %v763 = vunpack.c.l.b16 %v674
    %v764 = vunpack.c.h.b16 %v674
    %v765 = vunpack.c.l.b16 %v675
    %v766 = vunpack.c.h.b16 %v675
    %v767 = vunpack.c.l.b16 %v676
    %v768 = vunpack.c.h.b16 %v676
    %v769 = vunpack.c.l.b16 %v677
    %v770 = vunpack.c.h.b16 %v677
    %v771 = vunpack.c.l.b16 %v678
    %v772 = vunpack.c.h.b16 %v678
    %v773 = vunpack.c.l.b16 %v679
    %v774 = vunpack.c.h.b16 %v679
    %v775 = vunpack.c.l.b16 %v680
    %v776 = vunpack.c.h.b16 %v680
    %v777 = vpack.c.b16 %v713, %v713
    %v778 = vpack.c.b16 %v714, %v714
    %v779 = vpack.c.b16 %v715, %v715
    %v780 = vpack.c.b16 %v716, %v716
    %v781 = vpack.c.b16 %v717, %v717
    %v782 = vpack.c.b16 %v718, %v718
    %v783 = vpack.c.b16 %v719, %v719
    %v784 = vpack.c.b16 %v720, %v720
    %v785 = vpack.c.b16 %v721, %v721
    %v786 = vpack.c.b16 %v722, %v722
    %v787 = vpack.c.b16 %v723, %v723
    %v788 = vpack.c.b16 %v724, %v724
    %v789 = vpack.c.b16 %v725, %v725
    %v790 = vpack.c.b16 %v726, %v726
    %v791 = vpack.c.b16 %v727, %v727
    %v792 = vpack.c.b16 %v728, %v728
    %v793 = vpack.c.b16 %v729, %v729
    %v794 = vpack.c.b16 %v730, %v730
    %v795 = vpack.c.b16 %v731, %v731
    %v796 = vpack.c.b16 %v732, %v732
    %v797 = vpack.c.b16 %v733, %v733
    %v798 = vpack.c.b16 %v734, %v734
    %v799 = vpack.c.b16 %v735, %v735
    %v800 = vpack.c.b16 %v736, %v736
    %v801 = vpack.c.b16 %v737, %v737
    %v802 = vpack.c.b16 %v738, %v738
    %v803 = vpack.c.b16 %v739, %v739
    %v804 = vpack.c.b16 %v740, %v740
    %v805 = vpack.c.b16 %v741, %v741
    %v806 = vpack.c.b16 %v742, %v742
    %v807 = vpack.c.b16 %v743, %v743
    %v808 = vpack.c.b16 %v744, %v744
    %v809 = vpack.c.b16 %v745, %v745
    %v810 = vpack.c.b16 %v746, %v746
    %v811 = vpack.c.b16 %v747, %v747
    %v812 = vpack.c.b16 %v748, %v748
    %v813 = vpack.c.b16 %v749, %v749
    %v814 = vpack.c.b16 %v750, %v750
    %v815 = vpack.c.b16 %v751, %v751
    %v816 = vpack.c.b16 %v752, %v752
    %v817 = vpack.c.b16 %v753, %v753
    %v818 = vpack.c.b16 %v754, %v754
    %v819 = vpack.c.b16 %v755, %v755
    %v820 = vpack.c.b16 %v756, %v756
    %v821 = vpack.c.b16 %v757, %v757
    %v822 = vpack.c.b16 %v758, %v758
    %v823 = vpack.c.b16 %v759, %v759
    %v824 = vpack.c.b16 %v760, %v760
    %v825 = vpack.c.b16 %v761, %v761
    %v826 = vpack.c.b16 %v762, %v762
    %v827 = vpack.c.b16 %v763, %v763
    %v828 = vpack.c.b16 %v764, %v764
    %v829 = vpack.c.b16 %v765, %v765
    %v830 = vpack.c.b16 %v766, %v766
    %v831 = vpack.c.b16 %v767, %v767
    %v832 = vpack.c.b16 %v768, %v768
    %v833 = vpack.c.b16 %v769, %v769
    %v834 = vpack.c.b16 %v770, %v770
    %v835 = vpack.c.b16 %v771, %v771
    %v836 = vpack.c.b16 %v772, %v772
    %v837 = vpack.c.b16 %v773, %v773
    %v838 = vpack.c.b16 %v774, %v774
    %v839 = vpack.c.b16 %v775, %v775
    %v840 = vpack.c.b16 %v776, %v776
    %vm905 = vcmask 27648
    %906 = vst.msk [vmem:[%s2] sm:$0xf] %vm905, %v777
    %907 = vst.msk [vmem:[%s2 + $0x4] sm:$0xf] %vm905, %v778
    %908 = vst.msk [vmem:[%s2 + $0x8] sm:$0xf] %vm905, %v779
    %909 = vst.msk [vmem:[%s2 + $0xc] sm:$0xf] %vm905, %v780
    %910 = vst.msk [vmem:[%s2 + $0x10] sm:$0xf] %vm905, %v781
    %911 = vst.msk [vmem:[%s2 + $0x14] sm:$0xf] %vm905, %v782
    %912 = vst.msk [vmem:[%s2 + $0x18] sm:$0xf] %vm905, %v783
    %913 = vst.msk [vmem:[%s2 + $0x1c] sm:$0xf] %vm905, %v784
    %914 = vst.msk [vmem:[%s2 + $0x20] sm:$0xf] %vm905, %v785
    %915 = vst.msk [vmem:[%s2 + $0x24] sm:$0xf] %vm905, %v786
    %916 = vst.msk [vmem:[%s2 + $0x28] sm:$0xf] %vm905, %v787
    %917 = vst.msk [vmem:[%s2 + $0x2c] sm:$0xf] %vm905, %v788
    %918 = vst.msk [vmem:[%s2 + $0x30] sm:$0xf] %vm905, %v789
    %919 = vst.msk [vmem:[%s2 + $0x34] sm:$0xf] %vm905, %v790
    %920 = vst.msk [vmem:[%s2 + $0x38] sm:$0xf] %vm905, %v791
    %921 = vst.msk [vmem:[%s2 + $0x3c] sm:$0xf] %vm905, %v792
    %922 = vst.msk [vmem:[%s2 + $0x40] sm:$0xf] %vm905, %v793
    %923 = vst.msk [vmem:[%s2 + $0x44] sm:$0xf] %vm905, %v794
    %924 = vst.msk [vmem:[%s2 + $0x48] sm:$0xf] %vm905, %v795
    %925 = vst.msk [vmem:[%s2 + $0x4c] sm:$0xf] %vm905, %v796
    %926 = vst.msk [vmem:[%s2 + $0x50] sm:$0xf] %vm905, %v797
    %927 = vst.msk [vmem:[%s2 + $0x54] sm:$0xf] %vm905, %v798
    %928 = vst.msk [vmem:[%s2 + $0x58] sm:$0xf] %vm905, %v799
    %929 = vst.msk [vmem:[%s2 + $0x5c] sm:$0xf] %vm905, %v800
    %930 = vst.msk [vmem:[%s2 + $0x60] sm:$0xf] %vm905, %v801
    %931 = vst.msk [vmem:[%s2 + $0x64] sm:$0xf] %vm905, %v802
    %932 = vst.msk [vmem:[%s2 + $0x68] sm:$0xf] %vm905, %v803
    %933 = vst.msk [vmem:[%s2 + $0x6c] sm:$0xf] %vm905, %v804
    %934 = vst.msk [vmem:[%s2 + $0x70] sm:$0xf] %vm905, %v805
    %935 = vst.msk [vmem:[%s2 + $0x74] sm:$0xf] %vm905, %v806
    %936 = vst.msk [vmem:[%s2 + $0x78] sm:$0xf] %vm905, %v807
    %937 = vst.msk [vmem:[%s2 + $0x7c] sm:$0xf] %vm905, %v808
    %938 = vst.msk [vmem:[%s2 + $0x80] sm:$0xf] %vm905, %v809
    %939 = vst.msk [vmem:[%s2 + $0x84] sm:$0xf] %vm905, %v810
    %940 = vst.msk [vmem:[%s2 + $0x88] sm:$0xf] %vm905, %v811
    %941 = vst.msk [vmem:[%s2 + $0x8c] sm:$0xf] %vm905, %v812
    %942 = vst.msk [vmem:[%s2 + $0x90] sm:$0xf] %vm905, %v813
    %943 = vst.msk [vmem:[%s2 + $0x94] sm:$0xf] %vm905, %v814
    %944 = vst.msk [vmem:[%s2 + $0x98] sm:$0xf] %vm905, %v815
    %945 = vst.msk [vmem:[%s2 + $0x9c] sm:$0xf] %vm905, %v816
    %946 = vst.msk [vmem:[%s2 + $0xa0] sm:$0xf] %vm905, %v817
    %947 = vst.msk [vmem:[%s2 + $0xa4] sm:$0xf] %vm905, %v818
    %948 = vst.msk [vmem:[%s2 + $0xa8] sm:$0xf] %vm905, %v819
    %949 = vst.msk [vmem:[%s2 + $0xac] sm:$0xf] %vm905, %v820
    %950 = vst.msk [vmem:[%s2 + $0xb0] sm:$0xf] %vm905, %v821
    %951 = vst.msk [vmem:[%s2 + $0xb4] sm:$0xf] %vm905, %v822
    %952 = vst.msk [vmem:[%s2 + $0xb8] sm:$0xf] %vm905, %v823
    %953 = vst.msk [vmem:[%s2 + $0xbc] sm:$0xf] %vm905, %v824
    %954 = vst.msk [vmem:[%s2 + $0xc0] sm:$0xf] %vm905, %v825
    %955 = vst.msk [vmem:[%s2 + $0xc4] sm:$0xf] %vm905, %v826
    %956 = vst.msk [vmem:[%s2 + $0xc8] sm:$0xf] %vm905, %v827
    %957 = vst.msk [vmem:[%s2 + $0xcc] sm:$0xf] %vm905, %v828
    %958 = vst.msk [vmem:[%s2 + $0xd0] sm:$0xf] %vm905, %v829
    %959 = vst.msk [vmem:[%s2 + $0xd4] sm:$0xf] %vm905, %v830
    %960 = vst.msk [vmem:[%s2 + $0xd8] sm:$0xf] %vm905, %v831
    %961 = vst.msk [vmem:[%s2 + $0xdc] sm:$0xf] %vm905, %v832
    %962 = vst.msk [vmem:[%s2 + $0xe0] sm:$0xf] %vm905, %v833
    %963 = vst.msk [vmem:[%s2 + $0xe4] sm:$0xf] %vm905, %v834
    %964 = vst.msk [vmem:[%s2 + $0xe8] sm:$0xf] %vm905, %v835
    %965 = vst.msk [vmem:[%s2 + $0xec] sm:$0xf] %vm905, %v836
    %966 = vst.msk [vmem:[%s2 + $0xf0] sm:$0xf] %vm905, %v837
    %967 = vst.msk [vmem:[%s2 + $0xf4] sm:$0xf] %vm905, %v838
    %968 = vst.msk [vmem:[%s2 + $0xf8] sm:$0xf] %vm905, %v839
    %969 = vst.msk [vmem:[%s2 + $0xfc] sm:$0xf] %vm905, %v840
    %s970 = smul.u32 0, 512
    %s971 = ssub.s32 512, %s970
    %v972 = vlaneseq
    %v973 = vshrl.u32 %v972, 7
    %v974 = vadd.s32 %v973, 8
    %v975 = vadd.s32 %v973, 16
    %v976 = vadd.s32 %v973, 24
    %v977 = vadd.s32 %v973, 32
    %v978 = vadd.s32 %v973, 40
    %v979 = vadd.s32 %v973, 48
    %v980 = vadd.s32 %v973, 56
    %v981 = vadd.s32 %v973, 64
    %v982 = vadd.s32 %v973, 72
    %v983 = vadd.s32 %v973, 80
    %v984 = vadd.s32 %v973, 88
    %v985 = vadd.s32 %v973, 96
    %v986 = vadd.s32 %v973, 104
    %v987 = vadd.s32 %v973, 112
    %v988 = vadd.s32 %v973, 120
    %v989 = vadd.s32 %v973, 128
    %v990 = vadd.s32 %v973, 136
    %v991 = vadd.s32 %v973, 144
    %v992 = vadd.s32 %v973, 152
    %v993 = vadd.s32 %v973, 160
    %v994 = vadd.s32 %v973, 168
    %v995 = vadd.s32 %v973, 176
    %v996 = vadd.s32 %v973, 184
    %v997 = vadd.s32 %v973, 192
    %v998 = vadd.s32 %v973, 200
    %v999 = vadd.s32 %v973, 208
    %v1000 = vadd.s32 %v973, 216
    %v1001 = vadd.s32 %v973, 224
    %v1002 = vadd.s32 %v973, 232
    %v1003 = vadd.s32 %v973, 240
    %v1004 = vadd.s32 %v973, 248
    %v1005 = vadd.s32 %v973, 256
    %v1006 = vadd.s32 %v973, 264
    %v1007 = vadd.s32 %v973, 272
    %v1008 = vadd.s32 %v973, 280
    %v1009 = vadd.s32 %v973, 288
    %v1010 = vadd.s32 %v973, 296
    %v1011 = vadd.s32 %v973, 304
    %v1012 = vadd.s32 %v973, 312
    %v1013 = vadd.s32 %v973, 320
    %v1014 = vadd.s32 %v973, 328
    %v1015 = vadd.s32 %v973, 336
    %v1016 = vadd.s32 %v973, 344
    %v1017 = vadd.s32 %v973, 352
    %v1018 = vadd.s32 %v973, 360
    %v1019 = vadd.s32 %v973, 368
    %v1020 = vadd.s32 %v973, 376
    %v1021 = vadd.s32 %v973, 384
    %v1022 = vadd.s32 %v973, 392
    %v1023 = vadd.s32 %v973, 400
    %v1024 = vadd.s32 %v973, 408
    %v1025 = vadd.s32 %v973, 416
    %v1026 = vadd.s32 %v973, 424
    %v1027 = vadd.s32 %v973, 432
    %v1028 = vadd.s32 %v973, 440
    %v1029 = vadd.s32 %v973, 448
    %v1030 = vadd.s32 %v973, 456
    %v1031 = vadd.s32 %v973, 464
    %v1032 = vadd.s32 %v973, 472
    %v1033 = vadd.s32 %v973, 480
    %v1034 = vadd.s32 %v973, 488
    %v1035 = vadd.s32 %v973, 496
    %v1036 = vadd.s32 %v973, 504
    %v1037 = vstv %s971
    %vm1038 = vcmp.lt.s32.totalorder %v973, %v1037
    %vm1039 = vcmp.lt.s32.totalorder %v974, %v1037
    %vm1040 = vcmp.lt.s32.totalorder %v975, %v1037
    %vm1041 = vcmp.lt.s32.totalorder %v976, %v1037
    %vm1042 = vcmp.lt.s32.totalorder %v977, %v1037
    %vm1043 = vcmp.lt.s32.totalorder %v978, %v1037
    %vm1044 = vcmp.lt.s32.totalorder %v979, %v1037
    %vm1045 = vcmp.lt.s32.totalorder %v980, %v1037
    %vm1046 = vcmp.lt.s32.totalorder %v981, %v1037
    %vm1047 = vcmp.lt.s32.totalorder %v982, %v1037
    %vm1048 = vcmp.lt.s32.totalorder %v983, %v1037
    %vm1049 = vcmp.lt.s32.totalorder %v984, %v1037
    %vm1050 = vcmp.lt.s32.totalorder %v985, %v1037
    %vm1051 = vcmp.lt.s32.totalorder %v986, %v1037
    %vm1052 = vcmp.lt.s32.totalorder %v987, %v1037
    %vm1053 = vcmp.lt.s32.totalorder %v988, %v1037
    %vm1054 = vcmp.lt.s32.totalorder %v989, %v1037
    %vm1055 = vcmp.lt.s32.totalorder %v990, %v1037
    %vm1056 = vcmp.lt.s32.totalorder %v991, %v1037
    %vm1057 = vcmp.lt.s32.totalorder %v992, %v1037
    %vm1058 = vcmp.lt.s32.totalorder %v993, %v1037
    %vm1059 = vcmp.lt.s32.totalorder %v994, %v1037
    %vm1060 = vcmp.lt.s32.totalorder %v995, %v1037
    %vm1061 = vcmp.lt.s32.totalorder %v996, %v1037
    %vm1062 = vcmp.lt.s32.totalorder %v997, %v1037
    %vm1063 = vcmp.lt.s32.totalorder %v998, %v1037
    %vm1064 = vcmp.lt.s32.totalorder %v999, %v1037
    %vm1065 = vcmp.lt.s32.totalorder %v1000, %v1037
    %vm1066 = vcmp.lt.s32.totalorder %v1001, %v1037
    %vm1067 = vcmp.lt.s32.totalorder %v1002, %v1037
    %vm1068 = vcmp.lt.s32.totalorder %v1003, %v1037
    %vm1069 = vcmp.lt.s32.totalorder %v1004, %v1037
    %vm1070 = vcmp.lt.s32.totalorder %v1005, %v1037
    %vm1071 = vcmp.lt.s32.totalorder %v1006, %v1037
    %vm1072 = vcmp.lt.s32.totalorder %v1007, %v1037
    %vm1073 = vcmp.lt.s32.totalorder %v1008, %v1037
    %vm1074 = vcmp.lt.s32.totalorder %v1009, %v1037
    %vm1075 = vcmp.lt.s32.totalorder %v1010, %v1037
    %vm1076 = vcmp.lt.s32.totalorder %v1011, %v1037
    %vm1077 = vcmp.lt.s32.totalorder %v1012, %v1037
    %vm1078 = vcmp.lt.s32.totalorder %v1013, %v1037
    %vm1079 = vcmp.lt.s32.totalorder %v1014, %v1037
    %vm1080 = vcmp.lt.s32.totalorder %v1015, %v1037
    %vm1081 = vcmp.lt.s32.totalorder %v1016, %v1037
    %vm1082 = vcmp.lt.s32.totalorder %v1017, %v1037
    %vm1083 = vcmp.lt.s32.totalorder %v1018, %v1037
    %vm1084 = vcmp.lt.s32.totalorder %v1019, %v1037
    %vm1085 = vcmp.lt.s32.totalorder %v1020, %v1037
    %vm1086 = vcmp.lt.s32.totalorder %v1021, %v1037
    %vm1087 = vcmp.lt.s32.totalorder %v1022, %v1037
    %vm1088 = vcmp.lt.s32.totalorder %v1023, %v1037
    %vm1089 = vcmp.lt.s32.totalorder %v1024, %v1037
    %vm1090 = vcmp.lt.s32.totalorder %v1025, %v1037
    %vm1091 = vcmp.lt.s32.totalorder %v1026, %v1037
    %vm1092 = vcmp.lt.s32.totalorder %v1027, %v1037
    %vm1093 = vcmp.lt.s32.totalorder %v1028, %v1037
    %vm1094 = vcmp.lt.s32.totalorder %v1029, %v1037
    %vm1095 = vcmp.lt.s32.totalorder %v1030, %v1037
    %vm1096 = vcmp.lt.s32.totalorder %v1031, %v1037
    %vm1097 = vcmp.lt.s32.totalorder %v1032, %v1037
    %vm1098 = vcmp.lt.s32.totalorder %v1033, %v1037
    %vm1099 = vcmp.lt.s32.totalorder %v1034, %v1037
    %vm1100 = vcmp.lt.s32.totalorder %v1035, %v1037
    %vm1101 = vcmp.lt.s32.totalorder %v1036, %v1037
    %v1102 = vsel %vm1038, 1, 0
    %v1103 = vsel %vm1039, 1, 0
    %v1104 = vsel %vm1040, 1, 0
    %v1105 = vsel %vm1041, 1, 0
    %v1106 = vsel %vm1042, 1, 0
    %v1107 = vsel %vm1043, 1, 0
    %v1108 = vsel %vm1044, 1, 0
    %v1109 = vsel %vm1045, 1, 0
    %v1110 = vsel %vm1046, 1, 0
    %v1111 = vsel %vm1047, 1, 0
    %v1112 = vsel %vm1048, 1, 0
    %v1113 = vsel %vm1049, 1, 0
    %v1114 = vsel %vm1050, 1, 0
    %v1115 = vsel %vm1051, 1, 0
    %v1116 = vsel %vm1052, 1, 0
    %v1117 = vsel %vm1053, 1, 0
    %v1118 = vsel %vm1054, 1, 0
    %v1119 = vsel %vm1055, 1, 0
    %v1120 = vsel %vm1056, 1, 0
    %v1121 = vsel %vm1057, 1, 0
    %v1122 = vsel %vm1058, 1, 0
    %v1123 = vsel %vm1059, 1, 0
    %v1124 = vsel %vm1060, 1, 0
    %v1125 = vsel %vm1061, 1, 0
    %v1126 = vsel %vm1062, 1, 0
    %v1127 = vsel %vm1063, 1, 0
    %v1128 = vsel %vm1064, 1, 0
    %v1129 = vsel %vm1065, 1, 0
    %v1130 = vsel %vm1066, 1, 0
    %v1131 = vsel %vm1067, 1, 0
    %v1132 = vsel %vm1068, 1, 0
    %v1133 = vsel %vm1069, 1, 0
    %v1134 = vsel %vm1070, 1, 0
    %v1135 = vsel %vm1071, 1, 0
    %v1136 = vsel %vm1072, 1, 0
    %v1137 = vsel %vm1073, 1, 0
    %v1138 = vsel %vm1074, 1, 0
    %v1139 = vsel %vm1075, 1, 0
    %v1140 = vsel %vm1076, 1, 0
    %v1141 = vsel %vm1077, 1, 0
    %v1142 = vsel %vm1078, 1, 0
    %v1143 = vsel %vm1079, 1, 0
    %v1144 = vsel %vm1080, 1, 0
    %v1145 = vsel %vm1081, 1, 0
    %v1146 = vsel %vm1082, 1, 0
    %v1147 = vsel %vm1083, 1, 0
    %v1148 = vsel %vm1084, 1, 0
    %v1149 = vsel %vm1085, 1, 0
    %v1150 = vsel %vm1086, 1, 0
    %v1151 = vsel %vm1087, 1, 0
    %v1152 = vsel %vm1088, 1, 0
    %v1153 = vsel %vm1089, 1, 0
    %v1154 = vsel %vm1090, 1, 0
    %v1155 = vsel %vm1091, 1, 0
    %v1156 = vsel %vm1092, 1, 0
    %v1157 = vsel %vm1093, 1, 0
    %v1158 = vsel %vm1094, 1, 0
    %v1159 = vsel %vm1095, 1, 0
    %v1160 = vsel %vm1096, 1, 0
    %v1161 = vsel %vm1097, 1, 0
    %v1162 = vsel %vm1098, 1, 0
    %v1163 = vsel %vm1099, 1, 0
    %v1164 = vsel %vm1100, 1, 0
    %v1165 = vsel %vm1101, 1, 0
    %vm1166 = vcmp.eq.s32.totalorder %v1102, 1
    %vm1167 = vcmp.eq.s32.totalorder %v1103, 1
    %vm1168 = vcmp.eq.s32.totalorder %v1104, 1
    %vm1169 = vcmp.eq.s32.totalorder %v1105, 1
    %vm1170 = vcmp.eq.s32.totalorder %v1106, 1
    %vm1171 = vcmp.eq.s32.totalorder %v1107, 1
    %vm1172 = vcmp.eq.s32.totalorder %v1108, 1
    %vm1173 = vcmp.eq.s32.totalorder %v1109, 1
    %vm1174 = vcmp.eq.s32.totalorder %v1110, 1
    %vm1175 = vcmp.eq.s32.totalorder %v1111, 1
    %vm1176 = vcmp.eq.s32.totalorder %v1112, 1
    %vm1177 = vcmp.eq.s32.totalorder %v1113, 1
    %vm1178 = vcmp.eq.s32.totalorder %v1114, 1
    %vm1179 = vcmp.eq.s32.totalorder %v1115, 1
    %vm1180 = vcmp.eq.s32.totalorder %v1116, 1
    %vm1181 = vcmp.eq.s32.totalorder %v1117, 1
    %vm1182 = vcmp.eq.s32.totalorder %v1118, 1
    %vm1183 = vcmp.eq.s32.totalorder %v1119, 1
    %vm1184 = vcmp.eq.s32.totalorder %v1120, 1
    %vm1185 = vcmp.eq.s32.totalorder %v1121, 1
    %vm1186 = vcmp.eq.s32.totalorder %v1122, 1
    %vm1187 = vcmp.eq.s32.totalorder %v1123, 1
    %vm1188 = vcmp.eq.s32.totalorder %v1124, 1
    %vm1189 = vcmp.eq.s32.totalorder %v1125, 1
    %vm1190 = vcmp.eq.s32.totalorder %v1126, 1
    %vm1191 = vcmp.eq.s32.totalorder %v1127, 1
    %vm1192 = vcmp.eq.s32.totalorder %v1128, 1
    %vm1193 = vcmp.eq.s32.totalorder %v1129, 1
    %vm1194 = vcmp.eq.s32.totalorder %v1130, 1
    %vm1195 = vcmp.eq.s32.totalorder %v1131, 1
    %vm1196 = vcmp.eq.s32.totalorder %v1132, 1
    %vm1197 = vcmp.eq.s32.totalorder %v1133, 1
    %vm1198 = vcmp.eq.s32.totalorder %v1134, 1
    %vm1199 = vcmp.eq.s32.totalorder %v1135, 1
    %vm1200 = vcmp.eq.s32.totalorder %v1136, 1
    %vm1201 = vcmp.eq.s32.totalorder %v1137, 1
    %vm1202 = vcmp.eq.s32.totalorder %v1138, 1
    %vm1203 = vcmp.eq.s32.totalorder %v1139, 1
    %vm1204 = vcmp.eq.s32.totalorder %v1140, 1
    %vm1205 = vcmp.eq.s32.totalorder %v1141, 1
    %vm1206 = vcmp.eq.s32.totalorder %v1142, 1
    %vm1207 = vcmp.eq.s32.totalorder %v1143, 1
    %vm1208 = vcmp.eq.s32.totalorder %v1144, 1
    %vm1209 = vcmp.eq.s32.totalorder %v1145, 1
    %vm1210 = vcmp.eq.s32.totalorder %v1146, 1
    %vm1211 = vcmp.eq.s32.totalorder %v1147, 1
    %vm1212 = vcmp.eq.s32.totalorder %v1148, 1
    %vm1213 = vcmp.eq.s32.totalorder %v1149, 1
    %vm1214 = vcmp.eq.s32.totalorder %v1150, 1
    %vm1215 = vcmp.eq.s32.totalorder %v1151, 1
    %vm1216 = vcmp.eq.s32.totalorder %v1152, 1
    %vm1217 = vcmp.eq.s32.totalorder %v1153, 1
    %vm1218 = vcmp.eq.s32.totalorder %v1154, 1
    %vm1219 = vcmp.eq.s32.totalorder %v1155, 1
    %vm1220 = vcmp.eq.s32.totalorder %v1156, 1
    %vm1221 = vcmp.eq.s32.totalorder %v1157, 1
    %vm1222 = vcmp.eq.s32.totalorder %v1158, 1
    %vm1223 = vcmp.eq.s32.totalorder %v1159, 1
    %vm1224 = vcmp.eq.s32.totalorder %v1160, 1
    %vm1225 = vcmp.eq.s32.totalorder %v1161, 1
    %vm1226 = vcmp.eq.s32.totalorder %v1162, 1
    %vm1227 = vcmp.eq.s32.totalorder %v1163, 1
    %vm1228 = vcmp.eq.s32.totalorder %v1164, 1
    %vm1229 = vcmp.eq.s32.totalorder %v1165, 1
    %v1230 = vsel %vm1166, %v395, 0.0
    %v1231 = vsel %vm1167, %v398, 0.0
    %v1232 = vsel %vm1168, %v403, 0.0
    %v1233 = vsel %vm1169, %v406, 0.0
    %v1234 = vsel %vm1170, %v411, 0.0
    %v1235 = vsel %vm1171, %v414, 0.0
    %v1236 = vsel %vm1172, %v419, 0.0
    %v1237 = vsel %vm1173, %v422, 0.0
    %v1238 = vsel %vm1174, %v427, 0.0
    %v1239 = vsel %vm1175, %v430, 0.0
    %v1240 = vsel %vm1176, %v435, 0.0
    %v1241 = vsel %vm1177, %v438, 0.0
    %v1242 = vsel %vm1178, %v443, 0.0
    %v1243 = vsel %vm1179, %v446, 0.0
    %v1244 = vsel %vm1180, %v451, 0.0
    %v1245 = vsel %vm1181, %v454, 0.0
    %v1246 = vsel %vm1182, %v459, 0.0
    %v1247 = vsel %vm1183, %v462, 0.0
    %v1248 = vsel %vm1184, %v467, 0.0
    %v1249 = vsel %vm1185, %v470, 0.0
    %v1250 = vsel %vm1186, %v475, 0.0
    %v1251 = vsel %vm1187, %v478, 0.0
    %v1252 = vsel %vm1188, %v483, 0.0
    %v1253 = vsel %vm1189, %v486, 0.0
    %v1254 = vsel %vm1190, %v491, 0.0
    %v1255 = vsel %vm1191, %v494, 0.0
    %v1256 = vsel %vm1192, %v499, 0.0
    %v1257 = vsel %vm1193, %v502, 0.0
    %v1258 = vsel %vm1194, %v507, 0.0
    %v1259 = vsel %vm1195, %v510, 0.0
    %v1260 = vsel %vm1196, %v515, 0.0
    %v1261 = vsel %vm1197, %v518, 0.0
    %v1262 = vsel %vm1198, %v523, 0.0
    %v1263 = vsel %vm1199, %v526, 0.0
    %v1264 = vsel %vm1200, %v531, 0.0
    %v1265 = vsel %vm1201, %v534, 0.0
    %v1266 = vsel %vm1202, %v539, 0.0
    %v1267 = vsel %vm1203, %v542, 0.0
    %v1268 = vsel %vm1204, %v547, 0.0
    %v1269 = vsel %vm1205, %v550, 0.0
    %v1270 = vsel %vm1206, %v555, 0.0
    %v1271 = vsel %vm1207, %v558, 0.0
    %v1272 = vsel %vm1208, %v563, 0.0
    %v1273 = vsel %vm1209, %v566, 0.0
    %v1274 = vsel %vm1210, %v571, 0.0
    %v1275 = vsel %vm1211, %v574, 0.0
    %v1276 = vsel %vm1212, %v579, 0.0
    %v1277 = vsel %vm1213, %v582, 0.0
    %v1278 = vsel %vm1214, %v587, 0.0
    %v1279 = vsel %vm1215, %v590, 0.0
    %v1280 = vsel %vm1216, %v595, 0.0
    %v1281 = vsel %vm1217, %v598, 0.0
    %v1282 = vsel %vm1218, %v603, 0.0
    %v1283 = vsel %vm1219, %v606, 0.0
    %v1284 = vsel %vm1220, %v611, 0.0
    %v1285 = vsel %vm1221, %v614, 0.0
    %v1286 = vsel %vm1222, %v619, 0.0
    %v1287 = vsel %vm1223, %v622, 0.0
    %v1288 = vsel %vm1224, %v627, 0.0
    %v1289 = vsel %vm1225, %v630, 0.0
    %v1290 = vsel %vm1226, %v635, 0.0
    %v1291 = vsel %vm1227, %v638, 0.0
    %v1292 = vsel %vm1228, %v643, 0.0
    %v1293 = vsel %vm1229, %v646, 0.0
    %vm1294 = vcmask 31744
    %v1295 = vsel %vm1294, %v1230, 0.0
    %v1296 = vsel %vm1294, %v1231, 0.0
    %v1297 = vadd.f32 %v1295, %v1296
    %v1298 = vsel %vm1294, %v1232, 0.0
    %v1299 = vadd.f32 %v1297, %v1298
    %v1300 = vsel %vm1294, %v1233, 0.0
    %v1301 = vadd.f32 %v1299, %v1300
    %v1302 = vsel %vm1294, %v1234, 0.0
    %v1303 = vadd.f32 %v1301, %v1302
    %v1304 = vsel %vm1294, %v1235, 0.0
    %v1305 = vadd.f32 %v1303, %v1304
    %v1306 = vsel %vm1294, %v1236, 0.0
    %v1307 = vadd.f32 %v1305, %v1306
    %v1308 = vsel %vm1294, %v1237, 0.0
    %v1309 = vadd.f32 %v1307, %v1308
    %v1310 = vsel %vm1294, %v1238, 0.0
    %v1311 = vadd.f32 %v1309, %v1310
    %v1312 = vsel %vm1294, %v1239, 0.0
    %v1313 = vadd.f32 %v1311, %v1312
    %v1314 = vsel %vm1294, %v1240, 0.0
    %v1315 = vadd.f32 %v1313, %v1314
    %v1316 = vsel %vm1294, %v1241, 0.0
    %v1317 = vadd.f32 %v1315, %v1316
    %v1318 = vsel %vm1294, %v1242, 0.0
    %v1319 = vadd.f32 %v1317, %v1318
    %v1320 = vsel %vm1294, %v1243, 0.0
    %v1321 = vadd.f32 %v1319, %v1320
    %v1322 = vsel %vm1294, %v1244, 0.0
    %v1323 = vadd.f32 %v1321, %v1322
    %v1324 = vsel %vm1294, %v1245, 0.0
    %v1325 = vadd.f32 %v1323, %v1324
    %v1326 = vsel %vm1294, %v1246, 0.0
    %v1327 = vadd.f32 %v1325, %v1326
    %v1328 = vsel %vm1294, %v1247, 0.0
    %v1329 = vadd.f32 %v1327, %v1328
    %v1330 = vsel %vm1294, %v1248, 0.0
    %v1331 = vadd.f32 %v1329, %v1330
    %v1332 = vsel %vm1294, %v1249, 0.0
    %v1333 = vadd.f32 %v1331, %v1332
    %v1334 = vsel %vm1294, %v1250, 0.0
    %v1335 = vadd.f32 %v1333, %v1334
    %v1336 = vsel %vm1294, %v1251, 0.0
    %v1337 = vadd.f32 %v1335, %v1336
    %v1338 = vsel %vm1294, %v1252, 0.0
    %v1339 = vadd.f32 %v1337, %v1338
    %v1340 = vsel %vm1294, %v1253, 0.0
    %v1341 = vadd.f32 %v1339, %v1340
    %v1342 = vsel %vm1294, %v1254, 0.0
    %v1343 = vadd.f32 %v1341, %v1342
    %v1344 = vsel %vm1294, %v1255, 0.0
    %v1345 = vadd.f32 %v1343, %v1344
    %v1346 = vsel %vm1294, %v1256, 0.0
    %v1347 = vadd.f32 %v1345, %v1346
    %v1348 = vsel %vm1294, %v1257, 0.0
    %v1349 = vadd.f32 %v1347, %v1348
    %v1350 = vsel %vm1294, %v1258, 0.0
    %v1351 = vadd.f32 %v1349, %v1350
    %v1352 = vsel %vm1294, %v1259, 0.0
    %v1353 = vadd.f32 %v1351, %v1352
    %v1354 = vsel %vm1294, %v1260, 0.0
    %v1355 = vadd.f32 %v1353, %v1354
    %v1356 = vsel %vm1294, %v1261, 0.0
    %v1357 = vadd.f32 %v1355, %v1356
    %v1358 = vsel %vm1294, %v1262, 0.0
    %v1359 = vadd.f32 %v1357, %v1358
    %v1360 = vsel %vm1294, %v1263, 0.0
    %v1361 = vadd.f32 %v1359, %v1360
    %v1362 = vsel %vm1294, %v1264, 0.0
    %v1363 = vadd.f32 %v1361, %v1362
    %v1364 = vsel %vm1294, %v1265, 0.0
    %v1365 = vadd.f32 %v1363, %v1364
    %v1366 = vsel %vm1294, %v1266, 0.0
    %v1367 = vadd.f32 %v1365, %v1366
    %v1368 = vsel %vm1294, %v1267, 0.0
    %v1369 = vadd.f32 %v1367, %v1368
    %v1370 = vsel %vm1294, %v1268, 0.0
    %v1371 = vadd.f32 %v1369, %v1370
    %v1372 = vsel %vm1294, %v1269, 0.0
    %v1373 = vadd.f32 %v1371, %v1372
    %v1374 = vsel %vm1294, %v1270, 0.0
    %v1375 = vadd.f32 %v1373, %v1374
    %v1376 = vsel %vm1294, %v1271, 0.0
    %v1377 = vadd.f32 %v1375, %v1376
    %v1378 = vsel %vm1294, %v1272, 0.0
    %v1379 = vadd.f32 %v1377, %v1378
    %v1380 = vsel %vm1294, %v1273, 0.0
    %v1381 = vadd.f32 %v1379, %v1380
    %v1382 = vsel %vm1294, %v1274, 0.0
    %v1383 = vadd.f32 %v1381, %v1382
    %v1384 = vsel %vm1294, %v1275, 0.0
    %v1385 = vadd.f32 %v1383, %v1384
    %v1386 = vsel %vm1294, %v1276, 0.0
    %v1387 = vadd.f32 %v1385, %v1386
    %v1388 = vsel %vm1294, %v1277, 0.0
    %v1389 = vadd.f32 %v1387, %v1388
    %v1390 = vsel %vm1294, %v1278, 0.0
    %v1391 = vadd.f32 %v1389, %v1390
    %v1392 = vsel %vm1294, %v1279, 0.0
    %v1393 = vadd.f32 %v1391, %v1392
    %v1394 = vsel %vm1294, %v1280, 0.0
    %v1395 = vadd.f32 %v1393, %v1394
    %v1396 = vsel %vm1294, %v1281, 0.0
    %v1397 = vadd.f32 %v1395, %v1396
    %v1398 = vsel %vm1294, %v1282, 0.0
    %v1399 = vadd.f32 %v1397, %v1398
    %v1400 = vsel %vm1294, %v1283, 0.0
    %v1401 = vadd.f32 %v1399, %v1400
    %v1402 = vsel %vm1294, %v1284, 0.0
    %v1403 = vadd.f32 %v1401, %v1402
    %v1404 = vsel %vm1294, %v1285, 0.0
    %v1405 = vadd.f32 %v1403, %v1404
    %v1406 = vsel %vm1294, %v1286, 0.0
    %v1407 = vadd.f32 %v1405, %v1406
    %v1408 = vsel %vm1294, %v1287, 0.0
    %v1409 = vadd.f32 %v1407, %v1408
    %v1410 = vsel %vm1294, %v1288, 0.0
    %v1411 = vadd.f32 %v1409, %v1410
    %v1412 = vsel %vm1294, %v1289, 0.0
    %v1413 = vadd.f32 %v1411, %v1412
    %v1414 = vsel %vm1294, %v1290, 0.0
    %v1415 = vadd.f32 %v1413, %v1414
    %v1416 = vsel %vm1294, %v1291, 0.0
    %v1417 = vadd.f32 %v1415, %v1416
    %v1418 = vsel %vm1294, %v1292, 0.0
    %v1419 = vadd.f32 %v1417, %v1418
    %v1420 = vsel %vm1294, %v1293, 0.0
    %v1421 = vadd.f32 %v1419, %v1420
    %v1422 = vrot.slane %v1421, 4
    %v1423 = vadd.f32 %v1421, %v1422
    %v1424 = vrot.slane %v1423, 2
    %v1425 = vadd.f32 %v1423, %v1424
    %v1426 = vrot.slane %v1425, 1
    %v1427 = vadd.f32 %v1425, %v1426
    %vm1428 = vcmask 24576
    %1429 = vst.msk [vmem:[#allocation2] sm:$0x1] %vm1428, %v1427
    %v1430 = vmul.f32 %v1230, %v1230
    %v1431 = vmul.f32 %v1231, %v1231
    %v1432 = vmul.f32 %v1232, %v1232
    %v1433 = vmul.f32 %v1233, %v1233
    %v1434 = vmul.f32 %v1234, %v1234
    %v1435 = vmul.f32 %v1235, %v1235
    %v1436 = vmul.f32 %v1236, %v1236
    %v1437 = vmul.f32 %v1237, %v1237
    %v1438 = vmul.f32 %v1238, %v1238
    %v1439 = vmul.f32 %v1239, %v1239
    %v1440 = vmul.f32 %v1240, %v1240
    %v1441 = vmul.f32 %v1241, %v1241
    %v1442 = vmul.f32 %v1242, %v1242
    %v1443 = vmul.f32 %v1243, %v1243
    %v1444 = vmul.f32 %v1244, %v1244
    %v1445 = vmul.f32 %v1245, %v1245
    %v1446 = vmul.f32 %v1246, %v1246
    %v1447 = vmul.f32 %v1247, %v1247
    %v1448 = vmul.f32 %v1248, %v1248
    %v1449 = vmul.f32 %v1249, %v1249
    %v1450 = vmul.f32 %v1250, %v1250
    %v1451 = vmul.f32 %v1251, %v1251
    %v1452 = vmul.f32 %v1252, %v1252
    %v1453 = vmul.f32 %v1253, %v1253
    %v1454 = vmul.f32 %v1254, %v1254
    %v1455 = vmul.f32 %v1255, %v1255
    %v1456 = vmul.f32 %v1256, %v1256
    %v1457 = vmul.f32 %v1257, %v1257
    %v1458 = vmul.f32 %v1258, %v1258
    %v1459 = vmul.f32 %v1259, %v1259
    %v1460 = vmul.f32 %v1260, %v1260
    %v1461 = vmul.f32 %v1261, %v1261
    %v1462 = vmul.f32 %v1262, %v1262
    %v1463 = vmul.f32 %v1263, %v1263
    %v1464 = vmul.f32 %v1264, %v1264
    %v1465 = vmul.f32 %v1265, %v1265
    %v1466 = vmul.f32 %v1266, %v1266
    %v1467 = vmul.f32 %v1267, %v1267
    %v1468 = vmul.f32 %v1268, %v1268
    %v1469 = vmul.f32 %v1269, %v1269
    %v1470 = vmul.f32 %v1270, %v1270
    %v1471 = vmul.f32 %v1271, %v1271
    %v1472 = vmul.f32 %v1272, %v1272
    %v1473 = vmul.f32 %v1273, %v1273
    %v1474 = vmul.f32 %v1274, %v1274
    %v1475 = vmul.f32 %v1275, %v1275
    %v1476 = vmul.f32 %v1276, %v1276
    %v1477 = vmul.f32 %v1277, %v1277
    %v1478 = vmul.f32 %v1278, %v1278
    %v1479 = vmul.f32 %v1279, %v1279
    %v1480 = vmul.f32 %v1280, %v1280
    %v1481 = vmul.f32 %v1281, %v1281
    %v1482 = vmul.f32 %v1282, %v1282
    %v1483 = vmul.f32 %v1283, %v1283
    %v1484 = vmul.f32 %v1284, %v1284
    %v1485 = vmul.f32 %v1285, %v1285
    %v1486 = vmul.f32 %v1286, %v1286
    %v1487 = vmul.f32 %v1287, %v1287
    %v1488 = vmul.f32 %v1288, %v1288
    %v1489 = vmul.f32 %v1289, %v1289
    %v1490 = vmul.f32 %v1290, %v1290
    %v1491 = vmul.f32 %v1291, %v1291
    %v1492 = vmul.f32 %v1292, %v1292
    %v1493 = vmul.f32 %v1293, %v1293
    %v1494 = vsel %vm1294, %v1430, 0.0
    %v1495 = vsel %vm1294, %v1431, 0.0
    %v1496 = vadd.f32 %v1494, %v1495
    %v1497 = vsel %vm1294, %v1432, 0.0
    %v1498 = vadd.f32 %v1496, %v1497
    %v1499 = vsel %vm1294, %v1433, 0.0
    %v1500 = vadd.f32 %v1498, %v1499
    %v1501 = vsel %vm1294, %v1434, 0.0
    %v1502 = vadd.f32 %v1500, %v1501
    %v1503 = vsel %vm1294, %v1435, 0.0
    %v1504 = vadd.f32 %v1502, %v1503
    %v1505 = vsel %vm1294, %v1436, 0.0
    %v1506 = vadd.f32 %v1504, %v1505
    %v1507 = vsel %vm1294, %v1437, 0.0
    %v1508 = vadd.f32 %v1506, %v1507
    %v1509 = vsel %vm1294, %v1438, 0.0
    %v1510 = vadd.f32 %v1508, %v1509
    %v1511 = vsel %vm1294, %v1439, 0.0
    %v1512 = vadd.f32 %v1510, %v1511
    %v1513 = vsel %vm1294, %v1440, 0.0
    %v1514 = vadd.f32 %v1512, %v1513
    %v1515 = vsel %vm1294, %v1441, 0.0
    %v1516 = vadd.f32 %v1514, %v1515
    %v1517 = vsel %vm1294, %v1442, 0.0
    %v1518 = vadd.f32 %v1516, %v1517
    %v1519 = vsel %vm1294, %v1443, 0.0
    %v1520 = vadd.f32 %v1518, %v1519
    %v1521 = vsel %vm1294, %v1444, 0.0
    %v1522 = vadd.f32 %v1520, %v1521
    %v1523 = vsel %vm1294, %v1445, 0.0
    %v1524 = vadd.f32 %v1522, %v1523
    %v1525 = vsel %vm1294, %v1446, 0.0
    %v1526 = vadd.f32 %v1524, %v1525
    %v1527 = vsel %vm1294, %v1447, 0.0
    %v1528 = vadd.f32 %v1526, %v1527
    %v1529 = vsel %vm1294, %v1448, 0.0
    %v1530 = vadd.f32 %v1528, %v1529
    %v1531 = vsel %vm1294, %v1449, 0.0
    %v1532 = vadd.f32 %v1530, %v1531
    %v1533 = vsel %vm1294, %v1450, 0.0
    %v1534 = vadd.f32 %v1532, %v1533
    %v1535 = vsel %vm1294, %v1451, 0.0
    %v1536 = vadd.f32 %v1534, %v1535
    %v1537 = vsel %vm1294, %v1452, 0.0
    %v1538 = vadd.f32 %v1536, %v1537
    %v1539 = vsel %vm1294, %v1453, 0.0
    %v1540 = vadd.f32 %v1538, %v1539
    %v1541 = vsel %vm1294, %v1454, 0.0
    %v1542 = vadd.f32 %v1540, %v1541
    %v1543 = vsel %vm1294, %v1455, 0.0
    %v1544 = vadd.f32 %v1542, %v1543
    %v1545 = vsel %vm1294, %v1456, 0.0
    %v1546 = vadd.f32 %v1544, %v1545
    %v1547 = vsel %vm1294, %v1457, 0.0
    %v1548 = vadd.f32 %v1546, %v1547
    %v1549 = vsel %vm1294, %v1458, 0.0
    %v1550 = vadd.f32 %v1548, %v1549
    %v1551 = vsel %vm1294, %v1459, 0.0
    %v1552 = vadd.f32 %v1550, %v1551
    %v1553 = vsel %vm1294, %v1460, 0.0
    %v1554 = vadd.f32 %v1552, %v1553
    %v1555 = vsel %vm1294, %v1461, 0.0
    %v1556 = vadd.f32 %v1554, %v1555
    %v1557 = vsel %vm1294, %v1462, 0.0
    %v1558 = vadd.f32 %v1556, %v1557
    %v1559 = vsel %vm1294, %v1463, 0.0
    %v1560 = vadd.f32 %v1558, %v1559
    %v1561 = vsel %vm1294, %v1464, 0.0
    %v1562 = vadd.f32 %v1560, %v1561
    %v1563 = vsel %vm1294, %v1465, 0.0
    %v1564 = vadd.f32 %v1562, %v1563
    %v1565 = vsel %vm1294, %v1466, 0.0
    %v1566 = vadd.f32 %v1564, %v1565
    %v1567 = vsel %vm1294, %v1467, 0.0
    %v1568 = vadd.f32 %v1566, %v1567
    %v1569 = vsel %vm1294, %v1468, 0.0
    %v1570 = vadd.f32 %v1568, %v1569
    %v1571 = vsel %vm1294, %v1469, 0.0
    %v1572 = vadd.f32 %v1570, %v1571
    %v1573 = vsel %vm1294, %v1470, 0.0
    %v1574 = vadd.f32 %v1572, %v1573
    %v1575 = vsel %vm1294, %v1471, 0.0
    %v1576 = vadd.f32 %v1574, %v1575
    %v1577 = vsel %vm1294, %v1472, 0.0
    %v1578 = vadd.f32 %v1576, %v1577
    %v1579 = vsel %vm1294, %v1473, 0.0
    %v1580 = vadd.f32 %v1578, %v1579
    %v1581 = vsel %vm1294, %v1474, 0.0
    %v1582 = vadd.f32 %v1580, %v1581
    %v1583 = vsel %vm1294, %v1475, 0.0
    %v1584 = vadd.f32 %v1582, %v1583
    %v1585 = vsel %vm1294, %v1476, 0.0
    %v1586 = vadd.f32 %v1584, %v1585
    %v1587 = vsel %vm1294, %v1477, 0.0
    %v1588 = vadd.f32 %v1586, %v1587
    %v1589 = vsel %vm1294, %v1478, 0.0
    %v1590 = vadd.f32 %v1588, %v1589
    %v1591 = vsel %vm1294, %v1479, 0.0
    %v1592 = vadd.f32 %v1590, %v1591
    %v1593 = vsel %vm1294, %v1480, 0.0
    %v1594 = vadd.f32 %v1592, %v1593
    %v1595 = vsel %vm1294, %v1481, 0.0
    %v1596 = vadd.f32 %v1594, %v1595
    %v1597 = vsel %vm1294, %v1482, 0.0
    %v1598 = vadd.f32 %v1596, %v1597
    %v1599 = vsel %vm1294, %v1483, 0.0
    %v1600 = vadd.f32 %v1598, %v1599
    %v1601 = vsel %vm1294, %v1484, 0.0
    %v1602 = vadd.f32 %v1600, %v1601
    %v1603 = vsel %vm1294, %v1485, 0.0
    %v1604 = vadd.f32 %v1602, %v1603
    %v1605 = vsel %vm1294, %v1486, 0.0
    %v1606 = vadd.f32 %v1604, %v1605
    %v1607 = vsel %vm1294, %v1487, 0.0
    %v1608 = vadd.f32 %v1606, %v1607
    %v1609 = vsel %vm1294, %v1488, 0.0
    %v1610 = vadd.f32 %v1608, %v1609
    %v1611 = vsel %vm1294, %v1489, 0.0
    %v1612 = vadd.f32 %v1610, %v1611
    %v1613 = vsel %vm1294, %v1490, 0.0
    %v1614 = vadd.f32 %v1612, %v1613
    %v1615 = vsel %vm1294, %v1491, 0.0
    %v1616 = vadd.f32 %v1614, %v1615
    %v1617 = vsel %vm1294, %v1492, 0.0
    %v1618 = vadd.f32 %v1616, %v1617
    %v1619 = vsel %vm1294, %v1493, 0.0
    %v1620 = vadd.f32 %v1618, %v1619
    %v1621 = vrot.slane %v1620, 4
    %v1622 = vadd.f32 %v1620, %v1621
    %v1623 = vrot.slane %v1622, 2
    %v1624 = vadd.f32 %v1622, %v1623
    %v1625 = vrot.slane %v1624, 1
    %v1626 = vadd.f32 %v1624, %v1625
    %1627 = vst.msk [vmem:[#allocation4] sm:$0x1] %vm1428, %v1626
    // Predicated region
    $region10: #{tpu_custom_call.1} parent=1 // pred_check
      _
    $region11: #{tpu_custom_call.1} parent=1 // pred_check_branch
      %1629 = sbr.rel (0) target = $region13
    $region12: #{tpu_custom_call.1} parent=1 // pred_region
      _
    $region13: #{tpu_custom_call.1} parent=1 // pred_fallthru
      _
    // Predicated region
    $region14: #{tpu_custom_call.1} parent=1 // pred_check
      _
    $region15: #{tpu_custom_call.1} parent=1 // pred_check_branch
      %1631 = sbr.rel (0) target = $region17
    $region16: #{tpu_custom_call.1} parent=1 // pred_region
      %s1633 = ssub.s32 16, 16
      %1634 = vsyncadd [#allocation3], %s1633
      %s1636 = sshll.u32 [#allocation2], 4
      %s1637 = int_to_ptr.vmem [resolvable:$true] %s1636
      %1639 = dma.vmem_to_hbm [thread:$0]  %s1637, 16, %s3, [#allocation3]
    $region17: #{tpu_custom_call.1} parent=1 // pred_fallthru
      _
    // Predicated region
    $region18: #{tpu_custom_call.1} parent=1 // pred_check
      _
    $region19: #{tpu_custom_call.1} parent=1 // pred_check_branch
      %1641 = sbr.rel (0) target = $region21
    $region20: #{tpu_custom_call.1} parent=1 // pred_region
      %s1643 = ssub.s32 16, 16
      %1644 = vsyncadd [#allocation5], %s1643
      %s1646 = sshll.u32 [#allocation4], 4
      %s1647 = int_to_ptr.vmem [resolvable:$true] %s1646
      %1649 = dma.vmem_to_hbm [thread:$0]  %s1647, 16, %s4, [#allocation5]
    $region21: #{tpu_custom_call.1} parent=1 // pred_fallthru
      _
    // Predicated region
    $region22: #{tpu_custom_call.1} parent=1 // pred_check
      _
    $region23: #{tpu_custom_call.1} parent=1 // pred_check_branch
      %1651 = sbr.rel (0) target = $region25
    $region24: #{tpu_custom_call.1} parent=1 // pred_region
      _
    $region25: #{tpu_custom_call.1} parent=1 // pred_fallthru
      _
    // Predicated region
    $region26: #{tpu_custom_call.1} parent=1 // pred_check
      _
    $region27: #{tpu_custom_call.1} parent=1 // pred_check_branch
      %1653 = sbr.rel (0) target = $region29
    $region28: #{tpu_custom_call.1} parent=1 // pred_region
      %1654 = dma.done [#allocation3], 16
    $region29: #{tpu_custom_call.1} parent=1 // pred_fallthru
      _
    // Predicated region
    $region30: #{tpu_custom_call.1} parent=1 // pred_check
      _
    $region31: #{tpu_custom_call.1} parent=1 // pred_check_branch
      %1656 = sbr.rel (0) target = $region33
    $region32: #{tpu_custom_call.1} parent=1 // pred_region
      %1657 = dma.done [#allocation5], 16
    $region33: #{tpu_custom_call.1} parent=1 // pred_fallthru
      _
    %1658 = vsyncpa [#allocation3], 1
    %1659 = vsyncpa [#allocation5], 1

</llo_original>
